<compile_context>
chip_gen: v6e
topology: v6e:2x2x1
jax: 0.10.0
libtpu: 0.0.40
codegen_flags: <defaults>
</compile_context>

<pallas_src>
import functools

import jax
import jax.numpy as jnp
from jax import lax
from jax.experimental import pallas as pl
from jax.experimental.pallas import tpu as pltpu


def triplet_loss_kernel(idx_ref, emb_t_ref, loss_ref):
    """One grid step handles TB triplets (triplets on the lane axis).

    idx_ref   : VMEM (1, 3*TB) int32   lane-packed [heads | winners | losers]
    emb_t_ref : VMEM (d, n)    float32 transposed embedding (resident block)
    loss_ref  : VMEM (1, TB)   float32 lane-dense output tile
    """
    n = emb_t_ref.shape[1]
    tb = loss_ref.shape[1]

    idx = idx_ref[...]                                     # (1, 3*TB)

    # Combined one-hot gather mask: column j selects embedding row idx[0, j].
    # Out-of-range indices give an all-zero column (loss == log 2), never an
    # OOB VMEM read.
    row = lax.broadcasted_iota(jnp.int32, (n, 3 * tb), 0)  # (n, 3*TB)
    oh = (row == idx).astype(jnp.float32)                  # one cmp + one cast

    # Single fused gather matmul: (d, n) @ (n, 3*TB) -> (d, 3*TB).
    # precision=HIGHEST pins the exact f32 MXU path (embedding ~1e-4).
    g = jnp.dot(emb_t_ref[...], oh,
                preferred_element_type=jnp.float32,
                precision=lax.Precision.HIGHEST)

    gh = g[:, 0:tb]                   # gathered heads         (d, TB)
    dw = gh - g[:, tb:2 * tb]         # head - winner          (d, TB)
    dl = gh - g[:, 2 * tb:3 * tb]     # head - loser           (d, TB)

    win2 = jnp.sum(dw * dw, axis=0, keepdims=True)          # ||x_h - x_w||^2, (1, TB)
    lose2 = jnp.sum(dl * dl, axis=0, keepdims=True)         # ||x_h - x_l||^2, (1, TB)

    # losses = -log(sigmoid(lose2 - win2)) == softplus(win2 - lose2), stable.
    x = win2 - lose2
    loss_ref[...] = jnp.maximum(x, 0.0) + jnp.log1p(jnp.exp(-jnp.abs(x)))


def prepare_embedding(embedding):
    """Hoist the (n, d) -> (d, n) transpose out of the per-call path."""
    return jnp.asarray(embedding, jnp.float32).T


@functools.partial(jax.jit, static_argnames=("tb",))
def triplet_dist_forward(h_w_l, emb_t, *, tb=256):
    """TripletDist.forward(h_w_l) -> losses (B,).  emb_t is embedding.T (d, n)."""
    B = h_w_l.shape[0]
    d, n = emb_t.shape

    n_tiles = max(1, (B + tb - 1) // tb)
    b_pad = n_tiles * tb

    hwl = jnp.asarray(h_w_l, jnp.int32)
    if b_pad != B:
        hwl = jnp.pad(hwl, ((0, b_pad - B), (0, 0)))       # padded rows -> index 0
    # Lane-pack per tile: [heads | winners | losers], tb lanes each, so each
    # kernel block is already a (1, 3*tb) lane-contiguous row (no in-kernel
    # sublane->lane relayout).
    idx_packed = (hwl.reshape(n_tiles, tb, 3)
                     .transpose(0, 2, 1)
                     .reshape(1, n_tiles * 3 * tb))

    # Explicit VMEM budget (tiled-layout padded) with headroom; keeps the
    # double-buffered resident embedding inside the scoped limit on
    # v5e (16 MiB default) and v7x (64 MiB physical / 32 MiB default).
    def _pad(x, m):
        return ((x + m - 1) // m) * m
    est = (2 * _pad(d, 8) * _pad(n, 128) * 4      # emb_t block, double-buffered
           + 2 * 8 * 3 * tb * 4                   # packed index block
           + 2 * 8 * tb * 4                       # output block
           + 3 * _pad(n, 8) * 3 * tb * 4          # one-hot mask + temps
           + 4 * _pad(d, 8) * 3 * tb * 4)         # gathered slabs / diffs
    vmem_limit = int(min(max(4 * est, 32 << 20), 56 << 20))

    out = pl.pallas_call(
        triplet_loss_kernel,
        out_shape=jax.ShapeDtypeStruct((1, b_pad), jnp.float32),
        grid_spec=pltpu.PrefetchScalarGridSpec(
            num_scalar_prefetch=0,
            grid=(n_tiles,),
            in_specs=[
                pl.BlockSpec((1, 3 * tb), lambda i: (0, i)),  # packed indices
                pl.BlockSpec((d, n), lambda i: (0, 0)),       # resident embedding
            ],
            out_specs=pl.BlockSpec((1, tb), lambda i: (0, i)),  # lane-dense tile
        ),
        compiler_params=pltpu.CompilerParams(
            dimension_semantics=("parallel",),
            vmem_limit_bytes=vmem_limit),
    )(idx_packed, emb_t)
    return out[0, :B]


def _reference(h_w_l, embedding):
    """Pure-JAX reference mirroring TripletDist.forward."""
    heads = embedding[h_w_l[:, 0]]
    winners = embedding[h_w_l[:, 1]]
    losers = embedding[h_w_l[:, 2]]
    win2 = jnp.sum((heads - winners) ** 2, axis=1)
    lose2 = jnp.sum((heads - losers) ** 2, axis=1)
    # -log(sigmoid(lose2 - win2)) == softplus(win2 - lose2)
    return jnp.logaddexp(0.0, win2 - lose2)


if __name__ == "__main__":
    key = jax.random.PRNGKey(0)
    n, d = 32, 2                   # module defaults: n items, d=2 embedding
    k_emb, k_idx1, k_idx2 = jax.random.split(key, 3)

    # deterministic stand-in for 0.0001 * rng.randn(n, d).astype('float32')
    embedding = (1e-4 * jax.random.normal(k_emb, (n, d))).astype(jnp.float32)
    emb_t = prepare_embedding(embedding)   # transpose hoisted out of the call path

    for num_answers, k in ((16, k_idx1), (200, k_idx2)):
        h_w_l = jax.random.randint(k, (num_answers, 3), 0, n, dtype=jnp.int32)
        losses = jax.block_until_ready(
            triplet_dist_forward(h_w_l, emb_t, tb=256))
        ref = _reference(h_w_l, embedding)
        assert losses.shape == (num_answers,), losses.shape
        assert jnp.allclose(losses, ref, rtol=1e-5, atol=1e-6), (losses, ref)

    print("KERNEL_OK")
</pallas_src>

<mosaic_0001>
module attributes {stable_mosaic.version = 11 : i64} {
  func.func @triplet_loss_kernel(%arg0: i32, %arg1: memref<1x768xi32, #tpu.memory_space<vmem>>, %arg2: memref<2x32xf32, #tpu.memory_space<vmem>>, %arg3: memref<1x256xf32, #tpu.memory_space<vmem>>) attributes {dimension_semantics = [#tpu.dimension_semantics<parallel>], iteration_bounds = array<i64: 1>, scalar_prefetch = 0 : i64, scratch_operands = 0 : i64, tpu.core_type = #tpu.core_type<tc>, window_params = [{transform_indices = @transform_0, window_bounds = array<i64: 1, 768>}, {pipeline_mode = #tpu.pipeline_mode<synchronous>, transform_indices = @transform_1, window_bounds = array<i64: 2, 32>}, {transform_indices = @transform_2, window_bounds = array<i64: 1, 256>}]} {
    %c0 = arith.constant 0 : index
    %c0_0 = arith.constant 0 : index
    %0 = vector.load %arg1[%c0, %c0_0] : memref<1x768xi32, #tpu.memory_space<vmem>>, vector<1x768xi32>
    %1 = tpu.iota {dimensions = array<i32: 0>} : vector<32x768xi32>
    %2 = vector.broadcast %0 : vector<1x768xi32> to vector<32x768xi32>
    %3 = arith.cmpi eq, %1, %2 : vector<32x768xi32>
    %4 = arith.extui %3 : vector<32x768xi1> to vector<32x768xi32>
    %5 = arith.sitofp %4 : vector<32x768xi32> to vector<32x768xf32>
    %c0_1 = arith.constant 0 : index
    %c0_2 = arith.constant 0 : index
    %6 = vector.load %arg2[%c0_1, %c0_2] : memref<2x32xf32, #tpu.memory_space<vmem>>, vector<2x32xf32>
    %cst = arith.constant dense<0.000000e+00> : vector<2x768xf32>
    %7 = tpu.matmul %6, %5, %cst {dimension_numbers = #tpu.dot_dimension_numbers<[1], [0], [0], [1], [0, 0, 1, 1], [], []>, precision = #tpu.contract_precision<fp32>} : vector<2x32xf32>, vector<32x768xf32>, vector<2x768xf32> -> vector<2x768xf32>
    %8 = vector.extract_strided_slice %7 {offsets = [0, 0], sizes = [2, 256], strides = [1, 1]} : vector<2x768xf32> to vector<2x256xf32>
    %9 = vector.extract_strided_slice %7 {offsets = [0, 256], sizes = [2, 256], strides = [1, 1]} : vector<2x768xf32> to vector<2x256xf32>
    %10 = arith.subf %8, %9 : vector<2x256xf32>
    %11 = vector.extract_strided_slice %7 {offsets = [0, 512], sizes = [2, 256], strides = [1, 1]} : vector<2x768xf32> to vector<2x256xf32>
    %12 = arith.subf %8, %11 : vector<2x256xf32>
    %13 = arith.mulf %10, %10 : vector<2x256xf32>
    %cst_3 = arith.constant dense<0.000000e+00> : vector<256xf32>
    %14 = vector.multi_reduction <add>, %13, %cst_3 [0] : vector<2x256xf32> to vector<256xf32>
    %15 = vector.shape_cast %14 : vector<256xf32> to vector<1x256xf32>
    %16 = arith.mulf %12, %12 : vector<2x256xf32>
    %cst_4 = arith.constant dense<0.000000e+00> : vector<256xf32>
    %17 = vector.multi_reduction <add>, %16, %cst_4 [0] : vector<2x256xf32> to vector<256xf32>
    %18 = vector.shape_cast %17 : vector<256xf32> to vector<1x256xf32>
    %19 = arith.subf %15, %18 : vector<1x256xf32>
    %cst_5 = arith.constant 0.000000e+00 : f32
    %20 = vector.broadcast %cst_5 : f32 to vector<1x256xf32>
    %21 = arith.maximumf %19, %20 : vector<1x256xf32>
    %22 = math.absf %19 : vector<1x256xf32>
    %cst_6 = arith.constant 0.000000e+00 : f32
    %23 = vector.broadcast %cst_6 : f32 to vector<1x256xf32>
    %24 = arith.subf %23, %22 : vector<1x256xf32>
    %25 = math.exp %24 : vector<1x256xf32>
    %26 = math.log1p %25 : vector<1x256xf32>
    %27 = arith.addf %21, %26 : vector<1x256xf32>
    %c0_7 = arith.constant 0 : index
    %c0_8 = arith.constant 0 : index
    %28 = vector.load %arg3[%c0_7, %c0_8] : memref<1x256xf32, #tpu.memory_space<vmem>>, vector<1x256xf32>
    tpu.vector_store %arg3[%c0_7, %c0_8], %27 {strides = array<i32>} : memref<1x256xf32, #tpu.memory_space<vmem>>, vector<1x256xf32>,
    return
  }
  func.func @transform_0(%arg0: i32) -> (i32, i32) {
    %c0_i32 = arith.constant 0 : i32
    %c0_i32_0 = arith.constant 0 : i32
    return %c0_i32, %arg0 : i32, i32
  }
  func.func @transform_1(%arg0: i32) -> (i32, i32) {
    %c0_i32 = arith.constant 0 : i32
    %c0_i32_0 = arith.constant 0 : i32
    %c0_i32_1 = arith.constant 0 : i32
    return %c0_i32, %c0_i32_0 : i32, i32
  }
  func.func @transform_2(%arg0: i32) -> (i32, i32) {
    %c0_i32 = arith.constant 0 : i32
    %c0_i32_0 = arith.constant 0 : i32
    return %c0_i32, %arg0 : i32, i32
  }
}

</mosaic_0001>

<llo_original>
// kernel: triplet_dist_forward.1
$region0: #{triplet_dist_forward.1}
  #allocation0 [shape = 'u32[]', space=smem, size = 0x4, offset = 0x4, fixed_abs, tag = 'smem constant byte address 0x4 - core index']
  #allocation1 [shape = 'u32[144,128]{1,0:T(1,128)}', space=vmem, size = 0x12000, scoped, tag = 'internal scratch']
  %s0 = inlined_call_operand.vmem [shape: s32[1,768], index: 0, kind: input, shape index: {}]
  %s1 = inlined_call_operand.vmem [shape: f32[2,32], index: 1, kind: input, shape index: {}]
  %s2 = inlined_call_operand.vmem [shape: f32[1,256], index: 2, kind: output, shape index: {}]
  %s3 = sld [smem:[#allocation0]]
  $region18: #{triplet_dist_forward.1} parent=0
    _
  %s5 = ssub.s32 1, %s3
  %s6 = scalar_select 0, %s5, %s3
  // Predicated region
  $region2: #{triplet_dist_forward.1} parent=0 // pred_check
    _
  $region3: #{triplet_dist_forward.1} parent=0 // pred_check_branch
    %8 = sbr.rel (0) target = $region5
  $region4: #{triplet_dist_forward.1} parent=0 // pred_region
    _
  $region5: #{triplet_dist_forward.1} parent=0 // pred_fallthru
    _
  // Predicated region
  $region6: #{triplet_dist_forward.1} parent=0 // pred_check
    _
  $region7: #{triplet_dist_forward.1} parent=0 // pred_check_branch
    %10 = sbr.rel (0) target = $region9
  $region8: #{triplet_dist_forward.1} parent=0 // pred_region
    _
  $region9: #{triplet_dist_forward.1} parent=0 // pred_fallthru
    _
  %v11 = vld [vmem:[%s0] sm:$0x3f]
  %v12 = vlaneseq
  %v13 = vshrl.u32 %v12, 7
  %v14 = vadd.s32 %v13, 8
  %v15 = vadd.s32 %v13, 16
  %v16 = vadd.s32 %v13, 24
  %v17 = vlaneseq
  %v18 = vshrl.u32 %v17, 7
  %v19 = vsub.s32 0, %v18
  %v20 = vrot.slane %v11, %v19
  %v21 = vlaneseq
  %v22 = vshrl.u32 %v21, 7
  %v23 = vsub.s32 1, %v22
  %v24 = vrot.slane %v11, %v23
  %v25 = vlaneseq
  %v26 = vshrl.u32 %v25, 7
  %v27 = vsub.s32 2, %v26
  %v28 = vrot.slane %v11, %v27
  %v29 = vlaneseq
  %v30 = vshrl.u32 %v29, 7
  %v31 = vsub.s32 3, %v30
  %v32 = vrot.slane %v11, %v31
  %v33 = vlaneseq
  %v34 = vshrl.u32 %v33, 7
  %v35 = vsub.s32 4, %v34
  %v36 = vrot.slane %v11, %v35
  %v37 = vlaneseq
  %v38 = vshrl.u32 %v37, 7
  %v39 = vsub.s32 5, %v38
  %v40 = vrot.slane %v11, %v39
  %vm41 = vcmp.eq.s32.totalorder %v13, %v20
  %vm42 = vcmp.eq.s32.totalorder %v13, %v24
  %vm43 = vcmp.eq.s32.totalorder %v13, %v28
  %vm44 = vcmp.eq.s32.totalorder %v13, %v32
  %vm45 = vcmp.eq.s32.totalorder %v13, %v36
  %vm46 = vcmp.eq.s32.totalorder %v13, %v40
  %vm47 = vcmp.eq.s32.totalorder %v14, %v20
  %vm48 = vcmp.eq.s32.totalorder %v14, %v24
  %vm49 = vcmp.eq.s32.totalorder %v14, %v28
  %vm50 = vcmp.eq.s32.totalorder %v14, %v32
  %vm51 = vcmp.eq.s32.totalorder %v14, %v36
  %vm52 = vcmp.eq.s32.totalorder %v14, %v40
  %vm53 = vcmp.eq.s32.totalorder %v15, %v20
  %vm54 = vcmp.eq.s32.totalorder %v15, %v24
  %vm55 = vcmp.eq.s32.totalorder %v15, %v28
  %vm56 = vcmp.eq.s32.totalorder %v15, %v32
  %vm57 = vcmp.eq.s32.totalorder %v15, %v36
  %vm58 = vcmp.eq.s32.totalorder %v15, %v40
  %vm59 = vcmp.eq.s32.totalorder %v16, %v20
  %vm60 = vcmp.eq.s32.totalorder %v16, %v24
  %vm61 = vcmp.eq.s32.totalorder %v16, %v28
  %vm62 = vcmp.eq.s32.totalorder %v16, %v32
  %vm63 = vcmp.eq.s32.totalorder %v16, %v36
  %vm64 = vcmp.eq.s32.totalorder %v16, %v40
  %v65 = vsel %vm41, 1, 0
  %v66 = vsel %vm42, 1, 0
  %v67 = vsel %vm43, 1, 0
  %v68 = vsel %vm44, 1, 0
  %v69 = vsel %vm45, 1, 0
  %v70 = vsel %vm46, 1, 0
  %v71 = vsel %vm47, 1, 0
  %v72 = vsel %vm48, 1, 0
  %v73 = vsel %vm49, 1, 0
  %v74 = vsel %vm50, 1, 0
  %v75 = vsel %vm51, 1, 0
  %v76 = vsel %vm52, 1, 0
  %v77 = vsel %vm53, 1, 0
  %v78 = vsel %vm54, 1, 0
  %v79 = vsel %vm55, 1, 0
  %v80 = vsel %vm56, 1, 0
  %v81 = vsel %vm57, 1, 0
  %v82 = vsel %vm58, 1, 0
  %v83 = vsel %vm59, 1, 0
  %v84 = vsel %vm60, 1, 0
  %v85 = vsel %vm61, 1, 0
  %v86 = vsel %vm62, 1, 0
  %v87 = vsel %vm63, 1, 0
  %v88 = vsel %vm64, 1, 0
  %v89 = vcvt.s32.f32 %v65
  %v90 = vcvt.s32.f32 %v66
  %v91 = vcvt.s32.f32 %v67
  %v92 = vcvt.s32.f32 %v68
  %v93 = vcvt.s32.f32 %v69
  %v94 = vcvt.s32.f32 %v70
  %v95 = vcvt.s32.f32 %v71
  %v96 = vcvt.s32.f32 %v72
  %v97 = vcvt.s32.f32 %v73
  %v98 = vcvt.s32.f32 %v74
  %v99 = vcvt.s32.f32 %v75
  %v100 = vcvt.s32.f32 %v76
  %v101 = vcvt.s32.f32 %v77
  %v102 = vcvt.s32.f32 %v78
  %v103 = vcvt.s32.f32 %v79
  %v104 = vcvt.s32.f32 %v80
  %v105 = vcvt.s32.f32 %v81
  %v106 = vcvt.s32.f32 %v82
  %v107 = vcvt.s32.f32 %v83
  %v108 = vcvt.s32.f32 %v84
  %v109 = vcvt.s32.f32 %v85
  %v110 = vcvt.s32.f32 %v86
  %v111 = vcvt.s32.f32 %v87
  %v112 = vcvt.s32.f32 %v88
  %v113 = vld [vmem:[%s1] sm:$0x3]
  %vm114 = vcmask 261120
  %v116 = vsel %vm114, %v113, 0
  %118 = vmatprep.subr.mxu0 0.0
  %119 = vmatpush1.msra.mxu0 0.0
  %120 = vmatprep.subr.mxu0 0.0
  %121 = vmatpush1.msra.mxu0 0.0
  %122 = vmatprep.subr.mxu0 0.0
  %123 = vmatpush1.msra.mxu0 0.0
  %124 = vmatprep.subr.mxu0 0.0
  %125 = vmatpush1.msra.mxu0 0.0
  %126 = vmatprep.subr.mxu0 0.0
  %127 = vmatpush1.msra.mxu0 0.0
  %128 = vmatprep.subr.mxu0 0.0
  %129 = vmatpush1.msra.mxu0 0.0
  %130 = vmatprep.subr.mxu0 0.0
  %131 = vmatpush1.msra.mxu0 0.0
  %132 = vmatprep.subr.mxu0 0.0
  %133 = vmatpush1.msra.mxu0 0.0
  %134 = vmatprep.subr.mxu0 0.0
  %135 = vmatpush1.msra.mxu0 0.0
  %136 = vmatprep.subr.mxu0 0.0
  %137 = vmatpush1.msra.mxu0 0.0
  %138 = vmatprep.subr.mxu0 0.0
  %139 = vmatpush1.msra.mxu0 0.0
  %140 = vmatprep.subr.mxu0 0.0
  %141 = vmatpush1.msra.mxu0 0.0
  %v142 = vand.u32 %v108, 4294901760
  %143 = vmatprep.subr.mxu0 %v142
  %v144 = vand.u32 %v107, 4294901760
  %145 = vmatpush1.msra.mxu0 %v144
  %v146 = vand.u32 %v102, 4294901760
  %147 = vmatprep.subr.mxu0 %v146
  %v148 = vand.u32 %v101, 4294901760
  %149 = vmatpush1.msra.mxu0 %v148
  %v150 = vand.u32 %v96, 4294901760
  %151 = vmatprep.subr.mxu0 %v150
  %v152 = vand.u32 %v95, 4294901760
  %153 = vmatpush1.msra.mxu0 %v152
  %v154 = vand.u32 %v90, 4294901760
  %155 = vmatprep.subr.mxu0 %v154
  %v156 = vand.u32 %v89, 4294901760
  %157 = vmatpush1.msra.mxu0 %v156
  %158 = vmatprep.subr.mxu0 0.0
  %159 = vmatpush2.msra.mxu0 0.0
  %160 = vmatprep.subr.mxu0 0.0
  %161 = vmatpush2.msra.mxu0 0.0
  %162 = vmatprep.subr.mxu0 0.0
  %163 = vmatpush2.msra.mxu0 0.0
  %164 = vmatprep.subr.mxu0 0.0
  %165 = vmatpush2.msra.mxu0 0.0
  %166 = vmatprep.subr.mxu0 0.0
  %167 = vmatpush2.msra.mxu0 0.0
  %168 = vmatprep.subr.mxu0 0.0
  %169 = vmatpush2.msra.mxu0 0.0
  %170 = vmatprep.subr.mxu0 0.0
  %171 = vmatpush2.msra.mxu0 0.0
  %172 = vmatprep.subr.mxu0 0.0
  %173 = vmatpush2.msra.mxu0 0.0
  %174 = vmatprep.subr.mxu0 0.0
  %175 = vmatpush2.msra.mxu0 0.0
  %176 = vmatprep.subr.mxu0 0.0
  %177 = vmatpush2.msra.mxu0 0.0
  %178 = vmatprep.subr.mxu0 0.0
  %179 = vmatpush2.msra.mxu0 0.0
  %180 = vmatprep.subr.mxu0 0.0
  %181 = vmatpush2.msra.mxu0 0.0
  %182 = vmatprep.subr.mxu0 0.0
  %183 = vmatpush2.msra.mxu0 0.0
  %184 = vmatprep.subr.mxu0 0.0
  %185 = vmatpush2.msra.mxu0 0.0
  %186 = vmatprep.subr.mxu0 0.0
  %187 = vmatpush2.msra.mxu0 0.0
  %188 = vmatprep.subr.mxu0 0.0
  %189 = vmatpush2.msra.mxu0 0.0
  %190 = vmatprep.mubr.f32.mxu0 0.0
  %v191 = vand.u32 %v116, 4294901760
  %v192 = vsub.f32 %v116, %v191
  %v193 = vand.u32 %v192, 4294901760
  %v194 = vsub.f32 %v192, %v193
  %v195 = vand.u32 %v194, 4294901760
  %196 = vmatmul.mubr.f32.gmra.mxu0 %v195
  %v197 = vpop.f32.mrf.mxu0
  %v198 = vadd.f32 0.0, %v197
  %v199 = vpop.f32.mrf.mxu0
  %v200 = vadd.f32 0.0, %v199
  %201 = vdwg.mxu0
  %202 = vmatprep.subr.mxu0 0.0
  %203 = vmatpush1.msra.mxu0 0.0
  %204 = vmatprep.subr.mxu0 0.0
  %205 = vmatpush1.msra.mxu0 0.0
  %206 = vmatprep.subr.mxu0 0.0
  %207 = vmatpush1.msra.mxu0 0.0
  %208 = vmatprep.subr.mxu0 0.0
  %209 = vmatpush1.msra.mxu0 0.0
  %210 = vmatprep.subr.mxu0 0.0
  %211 = vmatpush1.msra.mxu0 0.0
  %212 = vmatprep.subr.mxu0 0.0
  %213 = vmatpush1.msra.mxu0 0.0
  %214 = vmatprep.subr.mxu0 0.0
  %215 = vmatpush1.msra.mxu0 0.0
  %216 = vmatprep.subr.mxu0 0.0
  %217 = vmatpush1.msra.mxu0 0.0
  %218 = vmatprep.subr.mxu0 0.0
  %219 = vmatpush1.msra.mxu0 0.0
  %220 = vmatprep.subr.mxu0 0.0
  %221 = vmatpush1.msra.mxu0 0.0
  %222 = vmatprep.subr.mxu0 0.0
  %223 = vmatpush1.msra.mxu0 0.0
  %224 = vmatprep.subr.mxu0 0.0
  %225 = vmatpush1.msra.mxu0 0.0
  %v226 = vand.u32 %v108, 4294901760
  %v227 = vsub.f32 %v108, %v226
  %v228 = vand.u32 %v227, 4294901760
  %v229 = vsub.f32 %v227, %v228
  %v230 = vand.u32 %v229, 4294901760
  %231 = vmatprep.subr.mxu0 %v230
  %v232 = vand.u32 %v107, 4294901760
  %v233 = vsub.f32 %v107, %v232
  %v234 = vand.u32 %v233, 4294901760
  %v235 = vsub.f32 %v233, %v234
  %v236 = vand.u32 %v235, 4294901760
  %237 = vmatpush1.msra.mxu0 %v236
  %v238 = vand.u32 %v102, 4294901760
  %v239 = vsub.f32 %v102, %v238
  %v240 = vand.u32 %v239, 4294901760
  %v241 = vsub.f32 %v239, %v240
  %v242 = vand.u32 %v241, 4294901760
  %243 = vmatprep.subr.mxu0 %v242
  %v244 = vand.u32 %v101, 4294901760
  %v245 = vsub.f32 %v101, %v244
  %v246 = vand.u32 %v245, 4294901760
  %v247 = vsub.f32 %v245, %v246
  %v248 = vand.u32 %v247, 4294901760
  %249 = vmatpush1.msra.mxu0 %v248
  %v250 = vand.u32 %v96, 4294901760
  %v251 = vsub.f32 %v96, %v250
  %v252 = vand.u32 %v251, 4294901760
  %v253 = vsub.f32 %v251, %v252
  %v254 = vand.u32 %v253, 4294901760
  %255 = vmatprep.subr.mxu0 %v254
  %v256 = vand.u32 %v95, 4294901760
  %v257 = vsub.f32 %v95, %v256
  %v258 = vand.u32 %v257, 4294901760
  %v259 = vsub.f32 %v257, %v258
  %v260 = vand.u32 %v259, 4294901760
  %261 = vmatpush1.msra.mxu0 %v260
  %v262 = vand.u32 %v90, 4294901760
  %v263 = vsub.f32 %v90, %v262
  %v264 = vand.u32 %v263, 4294901760
  %v265 = vsub.f32 %v263, %v264
  %v266 = vand.u32 %v265, 4294901760
  %267 = vmatprep.subr.mxu0 %v266
  %v268 = vand.u32 %v89, 4294901760
  %v269 = vsub.f32 %v89, %v268
  %v270 = vand.u32 %v269, 4294901760
  %v271 = vsub.f32 %v269, %v270
  %v272 = vand.u32 %v271, 4294901760
  %273 = vmatpush1.msra.mxu0 %v272
  %274 = vmatprep.subr.mxu0 0.0
  %275 = vmatpush2.msra.mxu0 0.0
  %276 = vmatprep.subr.mxu0 0.0
  %277 = vmatpush2.msra.mxu0 0.0
  %278 = vmatprep.subr.mxu0 0.0
  %279 = vmatpush2.msra.mxu0 0.0
  %280 = vmatprep.subr.mxu0 0.0
  %281 = vmatpush2.msra.mxu0 0.0
  %282 = vmatprep.subr.mxu0 0.0
  %283 = vmatpush2.msra.mxu0 0.0
  %284 = vmatprep.subr.mxu0 0.0
  %285 = vmatpush2.msra.mxu0 0.0
  %286 = vmatprep.subr.mxu0 0.0
  %287 = vmatpush2.msra.mxu0 0.0
  %288 = vmatprep.subr.mxu0 0.0
  %289 = vmatpush2.msra.mxu0 0.0
  %290 = vmatprep.subr.mxu0 0.0
  %291 = vmatpush2.msra.mxu0 0.0
  %292 = vmatprep.subr.mxu0 0.0
  %293 = vmatpush2.msra.mxu0 0.0
  %294 = vmatprep.subr.mxu0 0.0
  %295 = vmatpush2.msra.mxu0 0.0
  %296 = vmatprep.subr.mxu0 0.0
  %297 = vmatpush2.msra.mxu0 0.0
  %298 = vmatprep.subr.mxu0 0.0
  %299 = vmatpush2.msra.mxu0 0.0
  %300 = vmatprep.subr.mxu0 0.0
  %301 = vmatpush2.msra.mxu0 0.0
  %302 = vmatprep.subr.mxu0 0.0
  %303 = vmatpush2.msra.mxu0 0.0
  %304 = vmatprep.subr.mxu0 0.0
  %305 = vmatpush2.msra.mxu0 0.0
  %306 = vmatprep.mubr.f32.mxu0 0.0
  %v307 = vand.u32 %v116, 4294901760
  %308 = vmatmul.mubr.f32.gmra.mxu0 %v307
  %v309 = vpop.f32.mrf.mxu0
  %v310 = vadd.f32 %v198, %v309
  %v311 = vpop.f32.mrf.mxu0
  %v312 = vadd.f32 %v200, %v311
  %313 = vdwg.mxu0
  %314 = vmatprep.subr.mxu0 0.0
  %315 = vmatpush1.msra.mxu0 0.0
  %316 = vmatprep.subr.mxu0 0.0
  %317 = vmatpush1.msra.mxu0 0.0
  %318 = vmatprep.subr.mxu0 0.0
  %319 = vmatpush1.msra.mxu0 0.0
  %320 = vmatprep.subr.mxu0 0.0
  %321 = vmatpush1.msra.mxu0 0.0
  %322 = vmatprep.subr.mxu0 0.0
  %323 = vmatpush1.msra.mxu0 0.0
  %324 = vmatprep.subr.mxu0 0.0
  %325 = vmatpush1.msra.mxu0 0.0
  %326 = vmatprep.subr.mxu0 0.0
  %327 = vmatpush1.msra.mxu0 0.0
  %328 = vmatprep.subr.mxu0 0.0
  %329 = vmatpush1.msra.mxu0 0.0
  %330 = vmatprep.subr.mxu0 0.0
  %331 = vmatpush1.msra.mxu0 0.0
  %332 = vmatprep.subr.mxu0 0.0
  %333 = vmatpush1.msra.mxu0 0.0
  %334 = vmatprep.subr.mxu0 0.0
  %335 = vmatpush1.msra.mxu0 0.0
  %336 = vmatprep.subr.mxu0 0.0
  %337 = vmatpush1.msra.mxu0 0.0
  %v338 = vand.u32 %v108, 4294901760
  %v339 = vsub.f32 %v108, %v338
  %340 = vmatprep.subr.mxu0 %v339
  %v341 = vand.u32 %v107, 4294901760
  %v342 = vsub.f32 %v107, %v341
  %343 = vmatpush1.msra.mxu0 %v342
  %v344 = vand.u32 %v102, 4294901760
  %v345 = vsub.f32 %v102, %v344
  %346 = vmatprep.subr.mxu0 %v345
  %v347 = vand.u32 %v101, 4294901760
  %v348 = vsub.f32 %v101, %v347
  %349 = vmatpush1.msra.mxu0 %v348
  %v350 = vand.u32 %v96, 4294901760
  %v351 = vsub.f32 %v96, %v350
  %352 = vmatprep.subr.mxu0 %v351
  %v353 = vand.u32 %v95, 4294901760
  %v354 = vsub.f32 %v95, %v353
  %355 = vmatpush1.msra.mxu0 %v354
  %v356 = vand.u32 %v90, 4294901760
  %v357 = vsub.f32 %v90, %v356
  %358 = vmatprep.subr.mxu0 %v357
  %v359 = vand.u32 %v89, 4294901760
  %v360 = vsub.f32 %v89, %v359
  %361 = vmatpush1.msra.mxu0 %v360
  %362 = vmatprep.subr.mxu0 0.0
  %363 = vmatpush2.msra.mxu0 0.0
  %364 = vmatprep.subr.mxu0 0.0
  %365 = vmatpush2.msra.mxu0 0.0
  %366 = vmatprep.subr.mxu0 0.0
  %367 = vmatpush2.msra.mxu0 0.0
  %368 = vmatprep.subr.mxu0 0.0
  %369 = vmatpush2.msra.mxu0 0.0
  %370 = vmatprep.subr.mxu0 0.0
  %371 = vmatpush2.msra.mxu0 0.0
  %372 = vmatprep.subr.mxu0 0.0
  %373 = vmatpush2.msra.mxu0 0.0
  %374 = vmatprep.subr.mxu0 0.0
  %375 = vmatpush2.msra.mxu0 0.0
  %376 = vmatprep.subr.mxu0 0.0
  %377 = vmatpush2.msra.mxu0 0.0
  %378 = vmatprep.subr.mxu0 0.0
  %379 = vmatpush2.msra.mxu0 0.0
  %380 = vmatprep.subr.mxu0 0.0
  %381 = vmatpush2.msra.mxu0 0.0
  %382 = vmatprep.subr.mxu0 0.0
  %383 = vmatpush2.msra.mxu0 0.0
  %384 = vmatprep.subr.mxu0 0.0
  %385 = vmatpush2.msra.mxu0 0.0
  %386 = vmatprep.subr.mxu0 0.0
  %387 = vmatpush2.msra.mxu0 0.0
  %388 = vmatprep.subr.mxu0 0.0
  %389 = vmatpush2.msra.mxu0 0.0
  %390 = vmatprep.subr.mxu0 0.0
  %391 = vmatpush2.msra.mxu0 0.0
  %392 = vmatprep.subr.mxu0 0.0
  %393 = vmatpush2.msra.mxu0 0.0
  %394 = vmatprep.mubr.f32.mxu0 0.0
  %v395 = vand.u32 %v116, 4294901760
  %v396 = vsub.f32 %v116, %v395
  %397 = vmatmul.mubr.f32.gmra.mxu0 %v396
  %v398 = vpop.f32.mrf.mxu0
  %v399 = vadd.f32 %v310, %v398
  %v400 = vpop.f32.mrf.mxu0
  %v401 = vadd.f32 %v312, %v400
  %402 = vdwg.mxu0
  %403 = vmatprep.subr.mxu0 0.0
  %404 = vmatpush1.msra.mxu0 0.0
  %405 = vmatprep.subr.mxu0 0.0
  %406 = vmatpush1.msra.mxu0 0.0
  %407 = vmatprep.subr.mxu0 0.0
  %408 = vmatpush1.msra.mxu0 0.0
  %409 = vmatprep.subr.mxu0 0.0
  %410 = vmatpush1.msra.mxu0 0.0
  %411 = vmatprep.subr.mxu0 0.0
  %412 = vmatpush1.msra.mxu0 0.0
  %413 = vmatprep.subr.mxu0 0.0
  %414 = vmatpush1.msra.mxu0 0.0
  %415 = vmatprep.subr.mxu0 0.0
  %416 = vmatpush1.msra.mxu0 0.0
  %417 = vmatprep.subr.mxu0 0.0
  %418 = vmatpush1.msra.mxu0 0.0
  %419 = vmatprep.subr.mxu0 0.0
  %420 = vmatpush1.msra.mxu0 0.0
  %421 = vmatprep.subr.mxu0 0.0
  %422 = vmatpush1.msra.mxu0 0.0
  %423 = vmatprep.subr.mxu0 0.0
  %424 = vmatpush1.msra.mxu0 0.0
  %425 = vmatprep.subr.mxu0 0.0
  %426 = vmatpush1.msra.mxu0 0.0
  %v427 = vand.u32 %v108, 4294901760
  %428 = vmatprep.subr.mxu0 %v427
  %v429 = vand.u32 %v107, 4294901760
  %430 = vmatpush1.msra.mxu0 %v429
  %v431 = vand.u32 %v102, 4294901760
  %432 = vmatprep.subr.mxu0 %v431
  %v433 = vand.u32 %v101, 4294901760
  %434 = vmatpush1.msra.mxu0 %v433
  %v435 = vand.u32 %v96, 4294901760
  %436 = vmatprep.subr.mxu0 %v435
  %v437 = vand.u32 %v95, 4294901760
  %438 = vmatpush1.msra.mxu0 %v437
  %v439 = vand.u32 %v90, 4294901760
  %440 = vmatprep.subr.mxu0 %v439
  %v441 = vand.u32 %v89, 4294901760
  %442 = vmatpush1.msra.mxu0 %v441
  %443 = vmatprep.subr.mxu0 0.0
  %444 = vmatpush2.msra.mxu0 0.0
  %445 = vmatprep.subr.mxu0 0.0
  %446 = vmatpush2.msra.mxu0 0.0
  %447 = vmatprep.subr.mxu0 0.0
  %448 = vmatpush2.msra.mxu0 0.0
  %449 = vmatprep.subr.mxu0 0.0
  %450 = vmatpush2.msra.mxu0 0.0
  %451 = vmatprep.subr.mxu0 0.0
  %452 = vmatpush2.msra.mxu0 0.0
  %453 = vmatprep.subr.mxu0 0.0
  %454 = vmatpush2.msra.mxu0 0.0
  %455 = vmatprep.subr.mxu0 0.0
  %456 = vmatpush2.msra.mxu0 0.0
  %457 = vmatprep.subr.mxu0 0.0
  %458 = vmatpush2.msra.mxu0 0.0
  %459 = vmatprep.subr.mxu0 0.0
  %460 = vmatpush2.msra.mxu0 0.0
  %461 = vmatprep.subr.mxu0 0.0
  %462 = vmatpush2.msra.mxu0 0.0
  %463 = vmatprep.subr.mxu0 0.0
  %464 = vmatpush2.msra.mxu0 0.0
  %465 = vmatprep.subr.mxu0 0.0
  %466 = vmatpush2.msra.mxu0 0.0
  %467 = vmatprep.subr.mxu0 0.0
  %468 = vmatpush2.msra.mxu0 0.0
  %469 = vmatprep.subr.mxu0 0.0
  %470 = vmatpush2.msra.mxu0 0.0
  %471 = vmatprep.subr.mxu0 0.0
  %472 = vmatpush2.msra.mxu0 0.0
  %473 = vmatprep.subr.mxu0 0.0
  %474 = vmatpush2.msra.mxu0 0.0
  %475 = vmatprep.mubr.f32.mxu0 0.0
  %v476 = vand.u32 %v116, 4294901760
  %v477 = vsub.f32 %v116, %v476
  %v478 = vand.u32 %v477, 4294901760
  %479 = vmatmul.mubr.f32.gmra.mxu0 %v478
  %v480 = vpop.f32.mrf.mxu0
  %v481 = vadd.f32 %v399, %v480
  %v482 = vpop.f32.mrf.mxu0
  %v483 = vadd.f32 %v401, %v482
  %484 = vdwg.mxu0
  %485 = vmatprep.subr.mxu0 0.0
  %486 = vmatpush1.msra.mxu0 0.0
  %487 = vmatprep.subr.mxu0 0.0
  %488 = vmatpush1.msra.mxu0 0.0
  %489 = vmatprep.subr.mxu0 0.0
  %490 = vmatpush1.msra.mxu0 0.0
  %491 = vmatprep.subr.mxu0 0.0
  %492 = vmatpush1.msra.mxu0 0.0
  %493 = vmatprep.subr.mxu0 0.0
  %494 = vmatpush1.msra.mxu0 0.0
  %495 = vmatprep.subr.mxu0 0.0
  %496 = vmatpush1.msra.mxu0 0.0
  %497 = vmatprep.subr.mxu0 0.0
  %498 = vmatpush1.msra.mxu0 0.0
  %499 = vmatprep.subr.mxu0 0.0
  %500 = vmatpush1.msra.mxu0 0.0
  %501 = vmatprep.subr.mxu0 0.0
  %502 = vmatpush1.msra.mxu0 0.0
  %503 = vmatprep.subr.mxu0 0.0
  %504 = vmatpush1.msra.mxu0 0.0
  %505 = vmatprep.subr.mxu0 0.0
  %506 = vmatpush1.msra.mxu0 0.0
  %507 = vmatprep.subr.mxu0 0.0
  %508 = vmatpush1.msra.mxu0 0.0
  %v509 = vand.u32 %v108, 4294901760
  %v510 = vsub.f32 %v108, %v509
  %v511 = vand.u32 %v510, 4294901760
  %512 = vmatprep.subr.mxu0 %v511
  %v513 = vand.u32 %v107, 4294901760
  %v514 = vsub.f32 %v107, %v513
  %v515 = vand.u32 %v514, 4294901760
  %516 = vmatpush1.msra.mxu0 %v515
  %v517 = vand.u32 %v102, 4294901760
  %v518 = vsub.f32 %v102, %v517
  %v519 = vand.u32 %v518, 4294901760
  %520 = vmatprep.subr.mxu0 %v519
  %v521 = vand.u32 %v101, 4294901760
  %v522 = vsub.f32 %v101, %v521
  %v523 = vand.u32 %v522, 4294901760
  %524 = vmatpush1.msra.mxu0 %v523
  %v525 = vand.u32 %v96, 4294901760
  %v526 = vsub.f32 %v96, %v525
  %v527 = vand.u32 %v526, 4294901760
  %528 = vmatprep.subr.mxu0 %v527
  %v529 = vand.u32 %v95, 4294901760
  %v530 = vsub.f32 %v95, %v529
  %v531 = vand.u32 %v530, 4294901760
  %532 = vmatpush1.msra.mxu0 %v531
  %v533 = vand.u32 %v90, 4294901760
  %v534 = vsub.f32 %v90, %v533
  %v535 = vand.u32 %v534, 4294901760
  %536 = vmatprep.subr.mxu0 %v535
  %v537 = vand.u32 %v89, 4294901760
  %v538 = vsub.f32 %v89, %v537
  %v539 = vand.u32 %v538, 4294901760
  %540 = vmatpush1.msra.mxu0 %v539
  %541 = vmatprep.subr.mxu0 0.0
  %542 = vmatpush2.msra.mxu0 0.0
  %543 = vmatprep.subr.mxu0 0.0
  %544 = vmatpush2.msra.mxu0 0.0
  %545 = vmatprep.subr.mxu0 0.0
  %546 = vmatpush2.msra.mxu0 0.0
  %547 = vmatprep.subr.mxu0 0.0
  %548 = vmatpush2.msra.mxu0 0.0
  %549 = vmatprep.subr.mxu0 0.0
  %550 = vmatpush2.msra.mxu0 0.0
  %551 = vmatprep.subr.mxu0 0.0
  %552 = vmatpush2.msra.mxu0 0.0
  %553 = vmatprep.subr.mxu0 0.0
  %554 = vmatpush2.msra.mxu0 0.0
  %555 = vmatprep.subr.mxu0 0.0
  %556 = vmatpush2.msra.mxu0 0.0
  %557 = vmatprep.subr.mxu0 0.0
  %558 = vmatpush2.msra.mxu0 0.0
  %559 = vmatprep.subr.mxu0 0.0
  %560 = vmatpush2.msra.mxu0 0.0
  %561 = vmatprep.subr.mxu0 0.0
  %562 = vmatpush2.msra.mxu0 0.0
  %563 = vmatprep.subr.mxu0 0.0
  %564 = vmatpush2.msra.mxu0 0.0
  %565 = vmatprep.subr.mxu0 0.0
  %566 = vmatpush2.msra.mxu0 0.0
  %567 = vmatprep.subr.mxu0 0.0
  %568 = vmatpush2.msra.mxu0 0.0
  %569 = vmatprep.subr.mxu0 0.0
  %570 = vmatpush2.msra.mxu0 0.0
  %571 = vmatprep.subr.mxu0 0.0
  %572 = vmatpush2.msra.mxu0 0.0
  %573 = vmatprep.mubr.f32.mxu0 0.0
  %v574 = vand.u32 %v116, 4294901760
  %575 = vmatmul.mubr.f32.gmra.mxu0 %v574
  %v576 = vpop.f32.mrf.mxu0
  %v577 = vadd.f32 %v481, %v576
  %v578 = vpop.f32.mrf.mxu0
  %v579 = vadd.f32 %v483, %v578
  %580 = vdwg.mxu0
  %581 = vmatprep.subr.mxu0 0.0
  %582 = vmatpush1.msra.mxu0 0.0
  %583 = vmatprep.subr.mxu0 0.0
  %584 = vmatpush1.msra.mxu0 0.0
  %585 = vmatprep.subr.mxu0 0.0
  %586 = vmatpush1.msra.mxu0 0.0
  %587 = vmatprep.subr.mxu0 0.0
  %588 = vmatpush1.msra.mxu0 0.0
  %589 = vmatprep.subr.mxu0 0.0
  %590 = vmatpush1.msra.mxu0 0.0
  %591 = vmatprep.subr.mxu0 0.0
  %592 = vmatpush1.msra.mxu0 0.0
  %593 = vmatprep.subr.mxu0 0.0
  %594 = vmatpush1.msra.mxu0 0.0
  %595 = vmatprep.subr.mxu0 0.0
  %596 = vmatpush1.msra.mxu0 0.0
  %597 = vmatprep.subr.mxu0 0.0
  %598 = vmatpush1.msra.mxu0 0.0
  %599 = vmatprep.subr.mxu0 0.0
  %600 = vmatpush1.msra.mxu0 0.0
  %601 = vmatprep.subr.mxu0 0.0
  %602 = vmatpush1.msra.mxu0 0.0
  %603 = vmatprep.subr.mxu0 0.0
  %604 = vmatpush1.msra.mxu0 0.0
  %v605 = vand.u32 %v108, 4294901760
  %606 = vmatprep.subr.mxu0 %v605
  %v607 = vand.u32 %v107, 4294901760
  %608 = vmatpush1.msra.mxu0 %v607
  %v609 = vand.u32 %v102, 4294901760
  %610 = vmatprep.subr.mxu0 %v609
  %v611 = vand.u32 %v101, 4294901760
  %612 = vmatpush1.msra.mxu0 %v611
  %v613 = vand.u32 %v96, 4294901760
  %614 = vmatprep.subr.mxu0 %v613
  %v615 = vand.u32 %v95, 4294901760
  %616 = vmatpush1.msra.mxu0 %v615
  %v617 = vand.u32 %v90, 4294901760
  %618 = vmatprep.subr.mxu0 %v617
  %v619 = vand.u32 %v89, 4294901760
  %620 = vmatpush1.msra.mxu0 %v619
  %621 = vmatprep.subr.mxu0 0.0
  %622 = vmatpush2.msra.mxu0 0.0
  %623 = vmatprep.subr.mxu0 0.0
  %624 = vmatpush2.msra.mxu0 0.0
  %625 = vmatprep.subr.mxu0 0.0
  %626 = vmatpush2.msra.mxu0 0.0
  %627 = vmatprep.subr.mxu0 0.0
  %628 = vmatpush2.msra.mxu0 0.0
  %629 = vmatprep.subr.mxu0 0.0
  %630 = vmatpush2.msra.mxu0 0.0
  %631 = vmatprep.subr.mxu0 0.0
  %632 = vmatpush2.msra.mxu0 0.0
  %633 = vmatprep.subr.mxu0 0.0
  %634 = vmatpush2.msra.mxu0 0.0
  %635 = vmatprep.subr.mxu0 0.0
  %636 = vmatpush2.msra.mxu0 0.0
  %637 = vmatprep.subr.mxu0 0.0
  %638 = vmatpush2.msra.mxu0 0.0
  %639 = vmatprep.subr.mxu0 0.0
  %640 = vmatpush2.msra.mxu0 0.0
  %641 = vmatprep.subr.mxu0 0.0
  %642 = vmatpush2.msra.mxu0 0.0
  %643 = vmatprep.subr.mxu0 0.0
  %644 = vmatpush2.msra.mxu0 0.0
  %645 = vmatprep.subr.mxu0 0.0
  %646 = vmatpush2.msra.mxu0 0.0
  %647 = vmatprep.subr.mxu0 0.0
  %648 = vmatpush2.msra.mxu0 0.0
  %649 = vmatprep.subr.mxu0 0.0
  %650 = vmatpush2.msra.mxu0 0.0
  %651 = vmatprep.subr.mxu0 0.0
  %652 = vmatpush2.msra.mxu0 0.0
  %653 = vmatprep.mubr.f32.mxu0 0.0
  %v654 = vand.u32 %v116, 4294901760
  %655 = vmatmul.mubr.f32.gmra.mxu0 %v654
  %v656 = vpop.f32.mrf.mxu0
  %v657 = vadd.f32 %v577, %v656
  %v658 = vpop.f32.mrf.mxu0
  %v659 = vadd.f32 %v579, %v658
  %660 = vdwg.mxu0
  %661 = vmatprep.subr.mxu0 0.0
  %662 = vmatpush1.msra.mxu0 0.0
  %663 = vmatprep.subr.mxu0 0.0
  %664 = vmatpush1.msra.mxu0 0.0
  %665 = vmatprep.subr.mxu0 0.0
  %666 = vmatpush1.msra.mxu0 0.0
  %667 = vmatprep.subr.mxu0 0.0
  %668 = vmatpush1.msra.mxu0 0.0
  %669 = vmatprep.subr.mxu0 0.0
  %670 = vmatpush1.msra.mxu0 0.0
  %671 = vmatprep.subr.mxu0 0.0
  %672 = vmatpush1.msra.mxu0 0.0
  %673 = vmatprep.subr.mxu0 0.0
  %674 = vmatpush1.msra.mxu0 0.0
  %675 = vmatprep.subr.mxu0 0.0
  %676 = vmatpush1.msra.mxu0 0.0
  %677 = vmatprep.subr.mxu0 0.0
  %678 = vmatpush1.msra.mxu0 0.0
  %679 = vmatprep.subr.mxu0 0.0
  %680 = vmatpush1.msra.mxu0 0.0
  %681 = vmatprep.subr.mxu0 0.0
  %682 = vmatpush1.msra.mxu0 0.0
  %683 = vmatprep.subr.mxu0 0.0
  %684 = vmatpush1.msra.mxu0 0.0
  %v685 = vand.u32 %v110, 4294901760
  %686 = vmatprep.subr.mxu0 %v685
  %v687 = vand.u32 %v109, 4294901760
  %688 = vmatpush1.msra.mxu0 %v687
  %v689 = vand.u32 %v104, 4294901760
  %690 = vmatprep.subr.mxu0 %v689
  %v691 = vand.u32 %v103, 4294901760
  %692 = vmatpush1.msra.mxu0 %v691
  %v693 = vand.u32 %v98, 4294901760
  %694 = vmatprep.subr.mxu0 %v693
  %v695 = vand.u32 %v97, 4294901760
  %696 = vmatpush1.msra.mxu0 %v695
  %v697 = vand.u32 %v92, 4294901760
  %698 = vmatprep.subr.mxu0 %v697
  %v699 = vand.u32 %v91, 4294901760
  %700 = vmatpush1.msra.mxu0 %v699
  %701 = vmatprep.subr.mxu0 0.0
  %702 = vmatpush2.msra.mxu0 0.0
  %703 = vmatprep.subr.mxu0 0.0
  %704 = vmatpush2.msra.mxu0 0.0
  %705 = vmatprep.subr.mxu0 0.0
  %706 = vmatpush2.msra.mxu0 0.0
  %707 = vmatprep.subr.mxu0 0.0
  %708 = vmatpush2.msra.mxu0 0.0
  %709 = vmatprep.subr.mxu0 0.0
  %710 = vmatpush2.msra.mxu0 0.0
  %711 = vmatprep.subr.mxu0 0.0
  %712 = vmatpush2.msra.mxu0 0.0
  %713 = vmatprep.subr.mxu0 0.0
  %714 = vmatpush2.msra.mxu0 0.0
  %715 = vmatprep.subr.mxu0 0.0
  %716 = vmatpush2.msra.mxu0 0.0
  %717 = vmatprep.subr.mxu0 0.0
  %718 = vmatpush2.msra.mxu0 0.0
  %719 = vmatprep.subr.mxu0 0.0
  %720 = vmatpush2.msra.mxu0 0.0
  %721 = vmatprep.subr.mxu0 0.0
  %722 = vmatpush2.msra.mxu0 0.0
  %723 = vmatprep.subr.mxu0 0.0
  %724 = vmatpush2.msra.mxu0 0.0
  %725 = vmatprep.subr.mxu0 0.0
  %726 = vmatpush2.msra.mxu0 0.0
  %727 = vmatprep.subr.mxu0 0.0
  %728 = vmatpush2.msra.mxu0 0.0
  %729 = vmatprep.subr.mxu0 0.0
  %730 = vmatpush2.msra.mxu0 0.0
  %731 = vmatprep.subr.mxu0 0.0
  %732 = vmatpush2.msra.mxu0 0.0
  %733 = vmatprep.mubr.f32.mxu0 0.0
  %v734 = vand.u32 %v116, 4294901760
  %v735 = vsub.f32 %v116, %v734
  %v736 = vand.u32 %v735, 4294901760
  %v737 = vsub.f32 %v735, %v736
  %v738 = vand.u32 %v737, 4294901760
  %739 = vmatmul.mubr.f32.gmra.mxu0 %v738
  %v740 = vpop.f32.mrf.mxu0
  %v741 = vadd.f32 0.0, %v740
  %v742 = vpop.f32.mrf.mxu0
  %v743 = vadd.f32 0.0, %v742
  %744 = vdwg.mxu0
  %745 = vmatprep.subr.mxu0 0.0
  %746 = vmatpush1.msra.mxu0 0.0
  %747 = vmatprep.subr.mxu0 0.0
  %748 = vmatpush1.msra.mxu0 0.0
  %749 = vmatprep.subr.mxu0 0.0
  %750 = vmatpush1.msra.mxu0 0.0
  %751 = vmatprep.subr.mxu0 0.0
  %752 = vmatpush1.msra.mxu0 0.0
  %753 = vmatprep.subr.mxu0 0.0
  %754 = vmatpush1.msra.mxu0 0.0
  %755 = vmatprep.subr.mxu0 0.0
  %756 = vmatpush1.msra.mxu0 0.0
  %757 = vmatprep.subr.mxu0 0.0
  %758 = vmatpush1.msra.mxu0 0.0
  %759 = vmatprep.subr.mxu0 0.0
  %760 = vmatpush1.msra.mxu0 0.0
  %761 = vmatprep.subr.mxu0 0.0
  %762 = vmatpush1.msra.mxu0 0.0
  %763 = vmatprep.subr.mxu0 0.0
  %764 = vmatpush1.msra.mxu0 0.0
  %765 = vmatprep.subr.mxu0 0.0
  %766 = vmatpush1.msra.mxu0 0.0
  %767 = vmatprep.subr.mxu0 0.0
  %768 = vmatpush1.msra.mxu0 0.0
  %v769 = vand.u32 %v110, 4294901760
  %v770 = vsub.f32 %v110, %v769
  %v771 = vand.u32 %v770, 4294901760
  %v772 = vsub.f32 %v770, %v771
  %v773 = vand.u32 %v772, 4294901760
  %774 = vmatprep.subr.mxu0 %v773
  %v775 = vand.u32 %v109, 4294901760
  %v776 = vsub.f32 %v109, %v775
  %v777 = vand.u32 %v776, 4294901760
  %v778 = vsub.f32 %v776, %v777
  %v779 = vand.u32 %v778, 4294901760
  %780 = vmatpush1.msra.mxu0 %v779
  %v781 = vand.u32 %v104, 4294901760
  %v782 = vsub.f32 %v104, %v781
  %v783 = vand.u32 %v782, 4294901760
  %v784 = vsub.f32 %v782, %v783
  %v785 = vand.u32 %v784, 4294901760
  %786 = vmatprep.subr.mxu0 %v785
  %v787 = vand.u32 %v103, 4294901760
  %v788 = vsub.f32 %v103, %v787
  %v789 = vand.u32 %v788, 4294901760
  %v790 = vsub.f32 %v788, %v789
  %v791 = vand.u32 %v790, 4294901760
  %792 = vmatpush1.msra.mxu0 %v791
  %v793 = vand.u32 %v98, 4294901760
  %v794 = vsub.f32 %v98, %v793
  %v795 = vand.u32 %v794, 4294901760
  %v796 = vsub.f32 %v794, %v795
  %v797 = vand.u32 %v796, 4294901760
  %798 = vmatprep.subr.mxu0 %v797
  %v799 = vand.u32 %v97, 4294901760
  %v800 = vsub.f32 %v97, %v799
  %v801 = vand.u32 %v800, 4294901760
  %v802 = vsub.f32 %v800, %v801
  %v803 = vand.u32 %v802, 4294901760
  %804 = vmatpush1.msra.mxu0 %v803
  %v805 = vand.u32 %v92, 4294901760
  %v806 = vsub.f32 %v92, %v805
  %v807 = vand.u32 %v806, 4294901760
  %v808 = vsub.f32 %v806, %v807
  %v809 = vand.u32 %v808, 4294901760
  %810 = vmatprep.subr.mxu0 %v809
  %v811 = vand.u32 %v91, 4294901760
  %v812 = vsub.f32 %v91, %v811
  %v813 = vand.u32 %v812, 4294901760
  %v814 = vsub.f32 %v812, %v813
  %v815 = vand.u32 %v814, 4294901760
  %816 = vmatpush1.msra.mxu0 %v815
  %817 = vmatprep.subr.mxu0 0.0
  %818 = vmatpush2.msra.mxu0 0.0
  %819 = vmatprep.subr.mxu0 0.0
  %820 = vmatpush2.msra.mxu0 0.0
  %821 = vmatprep.subr.mxu0 0.0
  %822 = vmatpush2.msra.mxu0 0.0
  %823 = vmatprep.subr.mxu0 0.0
  %824 = vmatpush2.msra.mxu0 0.0
  %825 = vmatprep.subr.mxu0 0.0
  %826 = vmatpush2.msra.mxu0 0.0
  %827 = vmatprep.subr.mxu0 0.0
  %828 = vmatpush2.msra.mxu0 0.0
  %829 = vmatprep.subr.mxu0 0.0
  %830 = vmatpush2.msra.mxu0 0.0
  %831 = vmatprep.subr.mxu0 0.0
  %832 = vmatpush2.msra.mxu0 0.0
  %833 = vmatprep.subr.mxu0 0.0
  %834 = vmatpush2.msra.mxu0 0.0
  %835 = vmatprep.subr.mxu0 0.0
  %836 = vmatpush2.msra.mxu0 0.0
  %837 = vmatprep.subr.mxu0 0.0
  %838 = vmatpush2.msra.mxu0 0.0
  %839 = vmatprep.subr.mxu0 0.0
  %840 = vmatpush2.msra.mxu0 0.0
  %841 = vmatprep.subr.mxu0 0.0
  %842 = vmatpush2.msra.mxu0 0.0
  %843 = vmatprep.subr.mxu0 0.0
  %844 = vmatpush2.msra.mxu0 0.0
  %845 = vmatprep.subr.mxu0 0.0
  %846 = vmatpush2.msra.mxu0 0.0
  %847 = vmatprep.subr.mxu0 0.0
  %848 = vmatpush2.msra.mxu0 0.0
  %849 = vmatprep.mubr.f32.mxu0 0.0
  %v850 = vand.u32 %v116, 4294901760
  %851 = vmatmul.mubr.f32.gmra.mxu0 %v850
  %v852 = vpop.f32.mrf.mxu0
  %v853 = vadd.f32 %v741, %v852
  %v854 = vpop.f32.mrf.mxu0
  %v855 = vadd.f32 %v743, %v854
  %856 = vdwg.mxu0
  %857 = vmatprep.subr.mxu0 0.0
  %858 = vmatpush1.msra.mxu0 0.0
  %859 = vmatprep.subr.mxu0 0.0
  %860 = vmatpush1.msra.mxu0 0.0
  %861 = vmatprep.subr.mxu0 0.0
  %862 = vmatpush1.msra.mxu0 0.0
  %863 = vmatprep.subr.mxu0 0.0
  %864 = vmatpush1.msra.mxu0 0.0
  %865 = vmatprep.subr.mxu0 0.0
  %866 = vmatpush1.msra.mxu0 0.0
  %867 = vmatprep.subr.mxu0 0.0
  %868 = vmatpush1.msra.mxu0 0.0
  %869 = vmatprep.subr.mxu0 0.0
  %870 = vmatpush1.msra.mxu0 0.0
  %871 = vmatprep.subr.mxu0 0.0
  %872 = vmatpush1.msra.mxu0 0.0
  %873 = vmatprep.subr.mxu0 0.0
  %874 = vmatpush1.msra.mxu0 0.0
  %875 = vmatprep.subr.mxu0 0.0
  %876 = vmatpush1.msra.mxu0 0.0
  %877 = vmatprep.subr.mxu0 0.0
  %878 = vmatpush1.msra.mxu0 0.0
  %879 = vmatprep.subr.mxu0 0.0
  %880 = vmatpush1.msra.mxu0 0.0
  %v881 = vand.u32 %v110, 4294901760
  %v882 = vsub.f32 %v110, %v881
  %883 = vmatprep.subr.mxu0 %v882
  %v884 = vand.u32 %v109, 4294901760
  %v885 = vsub.f32 %v109, %v884
  %886 = vmatpush1.msra.mxu0 %v885
  %v887 = vand.u32 %v104, 4294901760
  %v888 = vsub.f32 %v104, %v887
  %889 = vmatprep.subr.mxu0 %v888
  %v890 = vand.u32 %v103, 4294901760
  %v891 = vsub.f32 %v103, %v890
  %892 = vmatpush1.msra.mxu0 %v891
  %v893 = vand.u32 %v98, 4294901760
  %v894 = vsub.f32 %v98, %v893
  %895 = vmatprep.subr.mxu0 %v894
  %v896 = vand.u32 %v97, 4294901760
  %v897 = vsub.f32 %v97, %v896
  %898 = vmatpush1.msra.mxu0 %v897
  %v899 = vand.u32 %v92, 4294901760
  %v900 = vsub.f32 %v92, %v899
  %901 = vmatprep.subr.mxu0 %v900
  %v902 = vand.u32 %v91, 4294901760
  %v903 = vsub.f32 %v91, %v902
  %904 = vmatpush1.msra.mxu0 %v903
  %905 = vmatprep.subr.mxu0 0.0
  %906 = vmatpush2.msra.mxu0 0.0
  %907 = vmatprep.subr.mxu0 0.0
  %908 = vmatpush2.msra.mxu0 0.0
  %909 = vmatprep.subr.mxu0 0.0
  %910 = vmatpush2.msra.mxu0 0.0
  %911 = vmatprep.subr.mxu0 0.0
  %912 = vmatpush2.msra.mxu0 0.0
  %913 = vmatprep.subr.mxu0 0.0
  %914 = vmatpush2.msra.mxu0 0.0
  %915 = vmatprep.subr.mxu0 0.0
  %916 = vmatpush2.msra.mxu0 0.0
  %917 = vmatprep.subr.mxu0 0.0
  %918 = vmatpush2.msra.mxu0 0.0
  %919 = vmatprep.subr.mxu0 0.0
  %920 = vmatpush2.msra.mxu0 0.0
  %921 = vmatprep.subr.mxu0 0.0
  %922 = vmatpush2.msra.mxu0 0.0
  %923 = vmatprep.subr.mxu0 0.0
  %924 = vmatpush2.msra.mxu0 0.0
  %925 = vmatprep.subr.mxu0 0.0
  %926 = vmatpush2.msra.mxu0 0.0
  %927 = vmatprep.subr.mxu0 0.0
  %928 = vmatpush2.msra.mxu0 0.0
  %929 = vmatprep.subr.mxu0 0.0
  %930 = vmatpush2.msra.mxu0 0.0
  %931 = vmatprep.subr.mxu0 0.0
  %932 = vmatpush2.msra.mxu0 0.0
  %933 = vmatprep.subr.mxu0 0.0
  %934 = vmatpush2.msra.mxu0 0.0
  %935 = vmatprep.subr.mxu0 0.0
  %936 = vmatpush2.msra.mxu0 0.0
  %937 = vmatprep.mubr.f32.mxu0 0.0
  %v938 = vand.u32 %v116, 4294901760
  %v939 = vsub.f32 %v116, %v938
  %940 = vmatmul.mubr.f32.gmra.mxu0 %v939
  %v941 = vpop.f32.mrf.mxu0
  %v942 = vadd.f32 %v853, %v941
  %v943 = vpop.f32.mrf.mxu0
  %v944 = vadd.f32 %v855, %v943
  %945 = vdwg.mxu0
  %946 = vmatprep.subr.mxu0 0.0
  %947 = vmatpush1.msra.mxu0 0.0
  %948 = vmatprep.subr.mxu0 0.0
  %949 = vmatpush1.msra.mxu0 0.0
  %950 = vmatprep.subr.mxu0 0.0
  %951 = vmatpush1.msra.mxu0 0.0
  %952 = vmatprep.subr.mxu0 0.0
  %953 = vmatpush1.msra.mxu0 0.0
  %954 = vmatprep.subr.mxu0 0.0
  %955 = vmatpush1.msra.mxu0 0.0
  %956 = vmatprep.subr.mxu0 0.0
  %957 = vmatpush1.msra.mxu0 0.0
  %958 = vmatprep.subr.mxu0 0.0
  %959 = vmatpush1.msra.mxu0 0.0
  %960 = vmatprep.subr.mxu0 0.0
  %961 = vmatpush1.msra.mxu0 0.0
  %962 = vmatprep.subr.mxu0 0.0
  %963 = vmatpush1.msra.mxu0 0.0
  %964 = vmatprep.subr.mxu0 0.0
  %965 = vmatpush1.msra.mxu0 0.0
  %966 = vmatprep.subr.mxu0 0.0
  %967 = vmatpush1.msra.mxu0 0.0
  %968 = vmatprep.subr.mxu0 0.0
  %969 = vmatpush1.msra.mxu0 0.0
  %v970 = vand.u32 %v110, 4294901760
  %971 = vmatprep.subr.mxu0 %v970
  %v972 = vand.u32 %v109, 4294901760
  %973 = vmatpush1.msra.mxu0 %v972
  %v974 = vand.u32 %v104, 4294901760
  %975 = vmatprep.subr.mxu0 %v974
  %v976 = vand.u32 %v103, 4294901760
  %977 = vmatpush1.msra.mxu0 %v976
  %v978 = vand.u32 %v98, 4294901760
  %979 = vmatprep.subr.mxu0 %v978
  %v980 = vand.u32 %v97, 4294901760
  %981 = vmatpush1.msra.mxu0 %v980
  %v982 = vand.u32 %v92, 4294901760
  %983 = vmatprep.subr.mxu0 %v982
  %v984 = vand.u32 %v91, 4294901760
  %985 = vmatpush1.msra.mxu0 %v984
  %986 = vmatprep.subr.mxu0 0.0
  %987 = vmatpush2.msra.mxu0 0.0
  %988 = vmatprep.subr.mxu0 0.0
  %989 = vmatpush2.msra.mxu0 0.0
  %990 = vmatprep.subr.mxu0 0.0
  %991 = vmatpush2.msra.mxu0 0.0
  %992 = vmatprep.subr.mxu0 0.0
  %993 = vmatpush2.msra.mxu0 0.0
  %994 = vmatprep.subr.mxu0 0.0
  %995 = vmatpush2.msra.mxu0 0.0
  %996 = vmatprep.subr.mxu0 0.0
  %997 = vmatpush2.msra.mxu0 0.0
  %998 = vmatprep.subr.mxu0 0.0
  %999 = vmatpush2.msra.mxu0 0.0
  %1000 = vmatprep.subr.mxu0 0.0
  %1001 = vmatpush2.msra.mxu0 0.0
  %1002 = vmatprep.subr.mxu0 0.0
  %1003 = vmatpush2.msra.mxu0 0.0
  %1004 = vmatprep.subr.mxu0 0.0
  %1005 = vmatpush2.msra.mxu0 0.0
  %1006 = vmatprep.subr.mxu0 0.0
  %1007 = vmatpush2.msra.mxu0 0.0
  %1008 = vmatprep.subr.mxu0 0.0
  %1009 = vmatpush2.msra.mxu0 0.0
  %1010 = vmatprep.subr.mxu0 0.0
  %1011 = vmatpush2.msra.mxu0 0.0
  %1012 = vmatprep.subr.mxu0 0.0
  %1013 = vmatpush2.msra.mxu0 0.0
  %1014 = vmatprep.subr.mxu0 0.0
  %1015 = vmatpush2.msra.mxu0 0.0
  %1016 = vmatprep.subr.mxu0 0.0
  %1017 = vmatpush2.msra.mxu0 0.0
  %1018 = vmatprep.mubr.f32.mxu0 0.0
  %v1019 = vand.u32 %v116, 4294901760
  %v1020 = vsub.f32 %v116, %v1019
  %v1021 = vand.u32 %v1020, 4294901760
  %1022 = vmatmul.mubr.f32.gmra.mxu0 %v1021
  %v1023 = vpop.f32.mrf.mxu0
  %v1024 = vadd.f32 %v942, %v1023
  %v1025 = vpop.f32.mrf.mxu0
  %v1026 = vadd.f32 %v944, %v1025
  %1027 = vdwg.mxu0
  %1028 = vmatprep.subr.mxu0 0.0
  %1029 = vmatpush1.msra.mxu0 0.0
  %1030 = vmatprep.subr.mxu0 0.0
  %1031 = vmatpush1.msra.mxu0 0.0
  %1032 = vmatprep.subr.mxu0 0.0
  %1033 = vmatpush1.msra.mxu0 0.0
  %1034 = vmatprep.subr.mxu0 0.0
  %1035 = vmatpush1.msra.mxu0 0.0
  %1036 = vmatprep.subr.mxu0 0.0
  %1037 = vmatpush1.msra.mxu0 0.0
  %1038 = vmatprep.subr.mxu0 0.0
  %1039 = vmatpush1.msra.mxu0 0.0
  %1040 = vmatprep.subr.mxu0 0.0
  %1041 = vmatpush1.msra.mxu0 0.0
  %1042 = vmatprep.subr.mxu0 0.0
  %1043 = vmatpush1.msra.mxu0 0.0
  %1044 = vmatprep.subr.mxu0 0.0
  %1045 = vmatpush1.msra.mxu0 0.0
  %1046 = vmatprep.subr.mxu0 0.0
  %1047 = vmatpush1.msra.mxu0 0.0
  %1048 = vmatprep.subr.mxu0 0.0
  %1049 = vmatpush1.msra.mxu0 0.0
  %1050 = vmatprep.subr.mxu0 0.0
  %1051 = vmatpush1.msra.mxu0 0.0
  %v1052 = vand.u32 %v110, 4294901760
  %v1053 = vsub.f32 %v110, %v1052
  %v1054 = vand.u32 %v1053, 4294901760
  %1055 = vmatprep.subr.mxu0 %v1054
  %v1056 = vand.u32 %v109, 4294901760
  %v1057 = vsub.f32 %v109, %v1056
  %v1058 = vand.u32 %v1057, 4294901760
  %1059 = vmatpush1.msra.mxu0 %v1058
  %v1060 = vand.u32 %v104, 4294901760
  %v1061 = vsub.f32 %v104, %v1060
  %v1062 = vand.u32 %v1061, 4294901760
  %1063 = vmatprep.subr.mxu0 %v1062
  %v1064 = vand.u32 %v103, 4294901760
  %v1065 = vsub.f32 %v103, %v1064
  %v1066 = vand.u32 %v1065, 4294901760
  %1067 = vmatpush1.msra.mxu0 %v1066
  %v1068 = vand.u32 %v98, 4294901760
  %v1069 = vsub.f32 %v98, %v1068
  %v1070 = vand.u32 %v1069, 4294901760
  %1071 = vmatprep.subr.mxu0 %v1070
  %v1072 = vand.u32 %v97, 4294901760
  %v1073 = vsub.f32 %v97, %v1072
  %v1074 = vand.u32 %v1073, 4294901760
  %1075 = vmatpush1.msra.mxu0 %v1074
  %v1076 = vand.u32 %v92, 4294901760
  %v1077 = vsub.f32 %v92, %v1076
  %v1078 = vand.u32 %v1077, 4294901760
  %1079 = vmatprep.subr.mxu0 %v1078
  %v1080 = vand.u32 %v91, 4294901760
  %v1081 = vsub.f32 %v91, %v1080
  %v1082 = vand.u32 %v1081, 4294901760
  %1083 = vmatpush1.msra.mxu0 %v1082
  %1084 = vmatprep.subr.mxu0 0.0
  %1085 = vmatpush2.msra.mxu0 0.0
  %1086 = vmatprep.subr.mxu0 0.0
  %1087 = vmatpush2.msra.mxu0 0.0
  %1088 = vmatprep.subr.mxu0 0.0
  %1089 = vmatpush2.msra.mxu0 0.0
  %1090 = vmatprep.subr.mxu0 0.0
  %1091 = vmatpush2.msra.mxu0 0.0
  %1092 = vmatprep.subr.mxu0 0.0
  %1093 = vmatpush2.msra.mxu0 0.0
  %1094 = vmatprep.subr.mxu0 0.0
  %1095 = vmatpush2.msra.mxu0 0.0
  %1096 = vmatprep.subr.mxu0 0.0
  %1097 = vmatpush2.msra.mxu0 0.0
  %1098 = vmatprep.subr.mxu0 0.0
  %1099 = vmatpush2.msra.mxu0 0.0
  %1100 = vmatprep.subr.mxu0 0.0
  %1101 = vmatpush2.msra.mxu0 0.0
  %1102 = vmatprep.subr.mxu0 0.0
  %1103 = vmatpush2.msra.mxu0 0.0
  %1104 = vmatprep.subr.mxu0 0.0
  %1105 = vmatpush2.msra.mxu0 0.0
  %1106 = vmatprep.subr.mxu0 0.0
  %1107 = vmatpush2.msra.mxu0 0.0
  %1108 = vmatprep.subr.mxu0 0.0
  %1109 = vmatpush2.msra.mxu0 0.0
  %1110 = vmatprep.subr.mxu0 0.0
  %1111 = vmatpush2.msra.mxu0 0.0
  %1112 = vmatprep.subr.mxu0 0.0
  %1113 = vmatpush2.msra.mxu0 0.0
  %1114 = vmatprep.subr.mxu0 0.0
  %1115 = vmatpush2.msra.mxu0 0.0
  %1116 = vmatprep.mubr.f32.mxu0 0.0
  %v1117 = vand.u32 %v116, 4294901760
  %1118 = vmatmul.mubr.f32.gmra.mxu0 %v1117
  %v1119 = vpop.f32.mrf.mxu0
  %v1120 = vadd.f32 %v1024, %v1119
  %v1121 = vpop.f32.mrf.mxu0
  %v1122 = vadd.f32 %v1026, %v1121
  %1123 = vdwg.mxu0
  %1124 = vmatprep.subr.mxu0 0.0
  %1125 = vmatpush1.msra.mxu0 0.0
  %1126 = vmatprep.subr.mxu0 0.0
  %1127 = vmatpush1.msra.mxu0 0.0
  %1128 = vmatprep.subr.mxu0 0.0
  %1129 = vmatpush1.msra.mxu0 0.0
  %1130 = vmatprep.subr.mxu0 0.0
  %1131 = vmatpush1.msra.mxu0 0.0
  %1132 = vmatprep.subr.mxu0 0.0
  %1133 = vmatpush1.msra.mxu0 0.0
  %1134 = vmatprep.subr.mxu0 0.0
  %1135 = vmatpush1.msra.mxu0 0.0
  %1136 = vmatprep.subr.mxu0 0.0
  %1137 = vmatpush1.msra.mxu0 0.0
  %1138 = vmatprep.subr.mxu0 0.0
  %1139 = vmatpush1.msra.mxu0 0.0
  %1140 = vmatprep.subr.mxu0 0.0
  %1141 = vmatpush1.msra.mxu0 0.0
  %1142 = vmatprep.subr.mxu0 0.0
  %1143 = vmatpush1.msra.mxu0 0.0
  %1144 = vmatprep.subr.mxu0 0.0
  %1145 = vmatpush1.msra.mxu0 0.0
  %1146 = vmatprep.subr.mxu0 0.0
  %1147 = vmatpush1.msra.mxu0 0.0
  %v1148 = vand.u32 %v110, 4294901760
  %1149 = vmatprep.subr.mxu0 %v1148
  %v1150 = vand.u32 %v109, 4294901760
  %1151 = vmatpush1.msra.mxu0 %v1150
  %v1152 = vand.u32 %v104, 4294901760
  %1153 = vmatprep.subr.mxu0 %v1152
  %v1154 = vand.u32 %v103, 4294901760
  %1155 = vmatpush1.msra.mxu0 %v1154
  %v1156 = vand.u32 %v98, 4294901760
  %1157 = vmatprep.subr.mxu0 %v1156
  %v1158 = vand.u32 %v97, 4294901760
  %1159 = vmatpush1.msra.mxu0 %v1158
  %v1160 = vand.u32 %v92, 4294901760
  %1161 = vmatprep.subr.mxu0 %v1160
  %v1162 = vand.u32 %v91, 4294901760
  %1163 = vmatpush1.msra.mxu0 %v1162
  %1164 = vmatprep.subr.mxu0 0.0
  %1165 = vmatpush2.msra.mxu0 0.0
  %1166 = vmatprep.subr.mxu0 0.0
  %1167 = vmatpush2.msra.mxu0 0.0
  %1168 = vmatprep.subr.mxu0 0.0
  %1169 = vmatpush2.msra.mxu0 0.0
  %1170 = vmatprep.subr.mxu0 0.0
  %1171 = vmatpush2.msra.mxu0 0.0
  %1172 = vmatprep.subr.mxu0 0.0
  %1173 = vmatpush2.msra.mxu0 0.0
  %1174 = vmatprep.subr.mxu0 0.0
  %1175 = vmatpush2.msra.mxu0 0.0
  %1176 = vmatprep.subr.mxu0 0.0
  %1177 = vmatpush2.msra.mxu0 0.0
  %1178 = vmatprep.subr.mxu0 0.0
  %1179 = vmatpush2.msra.mxu0 0.0
  %1180 = vmatprep.subr.mxu0 0.0
  %1181 = vmatpush2.msra.mxu0 0.0
  %1182 = vmatprep.subr.mxu0 0.0
  %1183 = vmatpush2.msra.mxu0 0.0
  %1184 = vmatprep.subr.mxu0 0.0
  %1185 = vmatpush2.msra.mxu0 0.0
  %1186 = vmatprep.subr.mxu0 0.0
  %1187 = vmatpush2.msra.mxu0 0.0
  %1188 = vmatprep.subr.mxu0 0.0
  %1189 = vmatpush2.msra.mxu0 0.0
  %1190 = vmatprep.subr.mxu0 0.0
  %1191 = vmatpush2.msra.mxu0 0.0
  %1192 = vmatprep.subr.mxu0 0.0
  %1193 = vmatpush2.msra.mxu0 0.0
  %1194 = vmatprep.subr.mxu0 0.0
  %1195 = vmatpush2.msra.mxu0 0.0
  %1196 = vmatprep.mubr.f32.mxu0 0.0
  %v1197 = vand.u32 %v116, 4294901760
  %1198 = vmatmul.mubr.f32.gmra.mxu0 %v1197
  %v1199 = vpop.f32.mrf.mxu0
  %v1200 = vadd.f32 %v1120, %v1199
  %v1201 = vpop.f32.mrf.mxu0
  %v1202 = vadd.f32 %v1122, %v1201
  %1203 = vdwg.mxu0
  %1204 = vmatprep.subr.mxu0 0.0
  %1205 = vmatpush1.msra.mxu0 0.0
  %1206 = vmatprep.subr.mxu0 0.0
  %1207 = vmatpush1.msra.mxu0 0.0
  %1208 = vmatprep.subr.mxu0 0.0
  %1209 = vmatpush1.msra.mxu0 0.0
  %1210 = vmatprep.subr.mxu0 0.0
  %1211 = vmatpush1.msra.mxu0 0.0
  %1212 = vmatprep.subr.mxu0 0.0
  %1213 = vmatpush1.msra.mxu0 0.0
  %1214 = vmatprep.subr.mxu0 0.0
  %1215 = vmatpush1.msra.mxu0 0.0
  %1216 = vmatprep.subr.mxu0 0.0
  %1217 = vmatpush1.msra.mxu0 0.0
  %1218 = vmatprep.subr.mxu0 0.0
  %1219 = vmatpush1.msra.mxu0 0.0
  %1220 = vmatprep.subr.mxu0 0.0
  %1221 = vmatpush1.msra.mxu0 0.0
  %1222 = vmatprep.subr.mxu0 0.0
  %1223 = vmatpush1.msra.mxu0 0.0
  %1224 = vmatprep.subr.mxu0 0.0
  %1225 = vmatpush1.msra.mxu0 0.0
  %1226 = vmatprep.subr.mxu0 0.0
  %1227 = vmatpush1.msra.mxu0 0.0
  %v1228 = vand.u32 %v112, 4294901760
  %1229 = vmatprep.subr.mxu0 %v1228
  %v1230 = vand.u32 %v111, 4294901760
  %1231 = vmatpush1.msra.mxu0 %v1230
  %v1232 = vand.u32 %v106, 4294901760
  %1233 = vmatprep.subr.mxu0 %v1232
  %v1234 = vand.u32 %v105, 4294901760
  %1235 = vmatpush1.msra.mxu0 %v1234
  %v1236 = vand.u32 %v100, 4294901760
  %1237 = vmatprep.subr.mxu0 %v1236
  %v1238 = vand.u32 %v99, 4294901760
  %1239 = vmatpush1.msra.mxu0 %v1238
  %v1240 = vand.u32 %v94, 4294901760
  %1241 = vmatprep.subr.mxu0 %v1240
  %v1242 = vand.u32 %v93, 4294901760
  %1243 = vmatpush1.msra.mxu0 %v1242
  %1244 = vmatprep.subr.mxu0 0.0
  %1245 = vmatpush2.msra.mxu0 0.0
  %1246 = vmatprep.subr.mxu0 0.0
  %1247 = vmatpush2.msra.mxu0 0.0
  %1248 = vmatprep.subr.mxu0 0.0
  %1249 = vmatpush2.msra.mxu0 0.0
  %1250 = vmatprep.subr.mxu0 0.0
  %1251 = vmatpush2.msra.mxu0 0.0
  %1252 = vmatprep.subr.mxu0 0.0
  %1253 = vmatpush2.msra.mxu0 0.0
  %1254 = vmatprep.subr.mxu0 0.0
  %1255 = vmatpush2.msra.mxu0 0.0
  %1256 = vmatprep.subr.mxu0 0.0
  %1257 = vmatpush2.msra.mxu0 0.0
  %1258 = vmatprep.subr.mxu0 0.0
  %1259 = vmatpush2.msra.mxu0 0.0
  %1260 = vmatprep.subr.mxu0 0.0
  %1261 = vmatpush2.msra.mxu0 0.0
  %1262 = vmatprep.subr.mxu0 0.0
  %1263 = vmatpush2.msra.mxu0 0.0
  %1264 = vmatprep.subr.mxu0 0.0
  %1265 = vmatpush2.msra.mxu0 0.0
  %1266 = vmatprep.subr.mxu0 0.0
  %1267 = vmatpush2.msra.mxu0 0.0
  %1268 = vmatprep.subr.mxu0 0.0
  %1269 = vmatpush2.msra.mxu0 0.0
  %1270 = vmatprep.subr.mxu0 0.0
  %1271 = vmatpush2.msra.mxu0 0.0
  %1272 = vmatprep.subr.mxu0 0.0
  %1273 = vmatpush2.msra.mxu0 0.0
  %1274 = vmatprep.subr.mxu0 0.0
  %1275 = vmatpush2.msra.mxu0 0.0
  %1276 = vmatprep.mubr.f32.mxu0 0.0
  %v1277 = vand.u32 %v116, 4294901760
  %v1278 = vsub.f32 %v116, %v1277
  %v1279 = vand.u32 %v1278, 4294901760
  %v1280 = vsub.f32 %v1278, %v1279
  %v1281 = vand.u32 %v1280, 4294901760
  %1282 = vmatmul.mubr.f32.gmra.mxu0 %v1281
  %v1283 = vpop.f32.mrf.mxu0
  %v1284 = vadd.f32 0.0, %v1283
  %v1285 = vpop.f32.mrf.mxu0
  %v1286 = vadd.f32 0.0, %v1285
  %1287 = vdwg.mxu0
  %1288 = vmatprep.subr.mxu0 0.0
  %1289 = vmatpush1.msra.mxu0 0.0
  %1290 = vmatprep.subr.mxu0 0.0
  %1291 = vmatpush1.msra.mxu0 0.0
  %1292 = vmatprep.subr.mxu0 0.0
  %1293 = vmatpush1.msra.mxu0 0.0
  %1294 = vmatprep.subr.mxu0 0.0
  %1295 = vmatpush1.msra.mxu0 0.0
  %1296 = vmatprep.subr.mxu0 0.0
  %1297 = vmatpush1.msra.mxu0 0.0
  %1298 = vmatprep.subr.mxu0 0.0
  %1299 = vmatpush1.msra.mxu0 0.0
  %1300 = vmatprep.subr.mxu0 0.0
  %1301 = vmatpush1.msra.mxu0 0.0
  %1302 = vmatprep.subr.mxu0 0.0
  %1303 = vmatpush1.msra.mxu0 0.0
  %1304 = vmatprep.subr.mxu0 0.0
  %1305 = vmatpush1.msra.mxu0 0.0
  %1306 = vmatprep.subr.mxu0 0.0
  %1307 = vmatpush1.msra.mxu0 0.0
  %1308 = vmatprep.subr.mxu0 0.0
  %1309 = vmatpush1.msra.mxu0 0.0
  %1310 = vmatprep.subr.mxu0 0.0
  %1311 = vmatpush1.msra.mxu0 0.0
  %v1312 = vand.u32 %v112, 4294901760
  %v1313 = vsub.f32 %v112, %v1312
  %v1314 = vand.u32 %v1313, 4294901760
  %v1315 = vsub.f32 %v1313, %v1314
  %v1316 = vand.u32 %v1315, 4294901760
  %1317 = vmatprep.subr.mxu0 %v1316
  %v1318 = vand.u32 %v111, 4294901760
  %v1319 = vsub.f32 %v111, %v1318
  %v1320 = vand.u32 %v1319, 4294901760
  %v1321 = vsub.f32 %v1319, %v1320
  %v1322 = vand.u32 %v1321, 4294901760
  %1323 = vmatpush1.msra.mxu0 %v1322
  %v1324 = vand.u32 %v106, 4294901760
  %v1325 = vsub.f32 %v106, %v1324
  %v1326 = vand.u32 %v1325, 4294901760
  %v1327 = vsub.f32 %v1325, %v1326
  %v1328 = vand.u32 %v1327, 4294901760
  %1329 = vmatprep.subr.mxu0 %v1328
  %v1330 = vand.u32 %v105, 4294901760
  %v1331 = vsub.f32 %v105, %v1330
  %v1332 = vand.u32 %v1331, 4294901760
  %v1333 = vsub.f32 %v1331, %v1332
  %v1334 = vand.u32 %v1333, 4294901760
  %1335 = vmatpush1.msra.mxu0 %v1334
  %v1336 = vand.u32 %v100, 4294901760
  %v1337 = vsub.f32 %v100, %v1336
  %v1338 = vand.u32 %v1337, 4294901760
  %v1339 = vsub.f32 %v1337, %v1338
  %v1340 = vand.u32 %v1339, 4294901760
  %1341 = vmatprep.subr.mxu0 %v1340
  %v1342 = vand.u32 %v99, 4294901760
  %v1343 = vsub.f32 %v99, %v1342
  %v1344 = vand.u32 %v1343, 4294901760
  %v1345 = vsub.f32 %v1343, %v1344
  %v1346 = vand.u32 %v1345, 4294901760
  %1347 = vmatpush1.msra.mxu0 %v1346
  %v1348 = vand.u32 %v94, 4294901760
  %v1349 = vsub.f32 %v94, %v1348
  %v1350 = vand.u32 %v1349, 4294901760
  %v1351 = vsub.f32 %v1349, %v1350
  %v1352 = vand.u32 %v1351, 4294901760
  %1353 = vmatprep.subr.mxu0 %v1352
  %v1354 = vand.u32 %v93, 4294901760
  %v1355 = vsub.f32 %v93, %v1354
  %v1356 = vand.u32 %v1355, 4294901760
  %v1357 = vsub.f32 %v1355, %v1356
  %v1358 = vand.u32 %v1357, 4294901760
  %1359 = vmatpush1.msra.mxu0 %v1358
  %1360 = vmatprep.subr.mxu0 0.0
  %1361 = vmatpush2.msra.mxu0 0.0
  %1362 = vmatprep.subr.mxu0 0.0
  %1363 = vmatpush2.msra.mxu0 0.0
  %1364 = vmatprep.subr.mxu0 0.0
  %1365 = vmatpush2.msra.mxu0 0.0
  %1366 = vmatprep.subr.mxu0 0.0
  %1367 = vmatpush2.msra.mxu0 0.0
  %1368 = vmatprep.subr.mxu0 0.0
  %1369 = vmatpush2.msra.mxu0 0.0
  %1370 = vmatprep.subr.mxu0 0.0
  %1371 = vmatpush2.msra.mxu0 0.0
  %1372 = vmatprep.subr.mxu0 0.0
  %1373 = vmatpush2.msra.mxu0 0.0
  %1374 = vmatprep.subr.mxu0 0.0
  %1375 = vmatpush2.msra.mxu0 0.0
  %1376 = vmatprep.subr.mxu0 0.0
  %1377 = vmatpush2.msra.mxu0 0.0
  %1378 = vmatprep.subr.mxu0 0.0
  %1379 = vmatpush2.msra.mxu0 0.0
  %1380 = vmatprep.subr.mxu0 0.0
  %1381 = vmatpush2.msra.mxu0 0.0
  %1382 = vmatprep.subr.mxu0 0.0
  %1383 = vmatpush2.msra.mxu0 0.0
  %1384 = vmatprep.subr.mxu0 0.0
  %1385 = vmatpush2.msra.mxu0 0.0
  %1386 = vmatprep.subr.mxu0 0.0
  %1387 = vmatpush2.msra.mxu0 0.0
  %1388 = vmatprep.subr.mxu0 0.0
  %1389 = vmatpush2.msra.mxu0 0.0
  %1390 = vmatprep.subr.mxu0 0.0
  %1391 = vmatpush2.msra.mxu0 0.0
  %1392 = vmatprep.mubr.f32.mxu0 0.0
  %v1393 = vand.u32 %v116, 4294901760
  %1394 = vmatmul.mubr.f32.gmra.mxu0 %v1393
  %v1395 = vpop.f32.mrf.mxu0
  %v1396 = vadd.f32 %v1284, %v1395
  %v1397 = vpop.f32.mrf.mxu0
  %v1398 = vadd.f32 %v1286, %v1397
  %1399 = vdwg.mxu0
  %1400 = vmatprep.subr.mxu0 0.0
  %1401 = vmatpush1.msra.mxu0 0.0
  %1402 = vmatprep.subr.mxu0 0.0
  %1403 = vmatpush1.msra.mxu0 0.0
  %1404 = vmatprep.subr.mxu0 0.0
  %1405 = vmatpush1.msra.mxu0 0.0
  %1406 = vmatprep.subr.mxu0 0.0
  %1407 = vmatpush1.msra.mxu0 0.0
  %1408 = vmatprep.subr.mxu0 0.0
  %1409 = vmatpush1.msra.mxu0 0.0
  %1410 = vmatprep.subr.mxu0 0.0
  %1411 = vmatpush1.msra.mxu0 0.0
  %1412 = vmatprep.subr.mxu0 0.0
  %1413 = vmatpush1.msra.mxu0 0.0
  %1414 = vmatprep.subr.mxu0 0.0
  %1415 = vmatpush1.msra.mxu0 0.0
  %1416 = vmatprep.subr.mxu0 0.0
  %1417 = vmatpush1.msra.mxu0 0.0
  %1418 = vmatprep.subr.mxu0 0.0
  %1419 = vmatpush1.msra.mxu0 0.0
  %1420 = vmatprep.subr.mxu0 0.0
  %1421 = vmatpush1.msra.mxu0 0.0
  %1422 = vmatprep.subr.mxu0 0.0
  %1423 = vmatpush1.msra.mxu0 0.0
  %v1424 = vand.u32 %v112, 4294901760
  %v1425 = vsub.f32 %v112, %v1424
  %1426 = vmatprep.subr.mxu0 %v1425
  %v1427 = vand.u32 %v111, 4294901760
  %v1428 = vsub.f32 %v111, %v1427
  %1429 = vmatpush1.msra.mxu0 %v1428
  %v1430 = vand.u32 %v106, 4294901760
  %v1431 = vsub.f32 %v106, %v1430
  %1432 = vmatprep.subr.mxu0 %v1431
  %v1433 = vand.u32 %v105, 4294901760
  %v1434 = vsub.f32 %v105, %v1433
  %1435 = vmatpush1.msra.mxu0 %v1434
  %v1436 = vand.u32 %v100, 4294901760
  %v1437 = vsub.f32 %v100, %v1436
  %1438 = vmatprep.subr.mxu0 %v1437
  %v1439 = vand.u32 %v99, 4294901760
  %v1440 = vsub.f32 %v99, %v1439
  %1441 = vmatpush1.msra.mxu0 %v1440
  %v1442 = vand.u32 %v94, 4294901760
  %v1443 = vsub.f32 %v94, %v1442
  %1444 = vmatprep.subr.mxu0 %v1443
  %v1445 = vand.u32 %v93, 4294901760
  %v1446 = vsub.f32 %v93, %v1445
  %1447 = vmatpush1.msra.mxu0 %v1446
  %1448 = vmatprep.subr.mxu0 0.0
  %1449 = vmatpush2.msra.mxu0 0.0
  %1450 = vmatprep.subr.mxu0 0.0
  %1451 = vmatpush2.msra.mxu0 0.0
  %1452 = vmatprep.subr.mxu0 0.0
  %1453 = vmatpush2.msra.mxu0 0.0
  %1454 = vmatprep.subr.mxu0 0.0
  %1455 = vmatpush2.msra.mxu0 0.0
  %1456 = vmatprep.subr.mxu0 0.0
  %1457 = vmatpush2.msra.mxu0 0.0
  %1458 = vmatprep.subr.mxu0 0.0
  %1459 = vmatpush2.msra.mxu0 0.0
  %1460 = vmatprep.subr.mxu0 0.0
  %1461 = vmatpush2.msra.mxu0 0.0
  %1462 = vmatprep.subr.mxu0 0.0
  %1463 = vmatpush2.msra.mxu0 0.0
  %1464 = vmatprep.subr.mxu0 0.0
  %1465 = vmatpush2.msra.mxu0 0.0
  %1466 = vmatprep.subr.mxu0 0.0
  %1467 = vmatpush2.msra.mxu0 0.0
  %1468 = vmatprep.subr.mxu0 0.0
  %1469 = vmatpush2.msra.mxu0 0.0
  %1470 = vmatprep.subr.mxu0 0.0
  %1471 = vmatpush2.msra.mxu0 0.0
  %1472 = vmatprep.subr.mxu0 0.0
  %1473 = vmatpush2.msra.mxu0 0.0
  %1474 = vmatprep.subr.mxu0 0.0
  %1475 = vmatpush2.msra.mxu0 0.0
  %1476 = vmatprep.subr.mxu0 0.0
  %1477 = vmatpush2.msra.mxu0 0.0
  %1478 = vmatprep.subr.mxu0 0.0
  %1479 = vmatpush2.msra.mxu0 0.0
  %1480 = vmatprep.mubr.f32.mxu0 0.0
  %v1481 = vand.u32 %v116, 4294901760
  %v1482 = vsub.f32 %v116, %v1481
  %1483 = vmatmul.mubr.f32.gmra.mxu0 %v1482
  %v1484 = vpop.f32.mrf.mxu0
  %v1485 = vadd.f32 %v1396, %v1484
  %v1486 = vpop.f32.mrf.mxu0
  %v1487 = vadd.f32 %v1398, %v1486
  %1488 = vdwg.mxu0
  %1489 = vmatprep.subr.mxu0 0.0
  %1490 = vmatpush1.msra.mxu0 0.0
  %1491 = vmatprep.subr.mxu0 0.0
  %1492 = vmatpush1.msra.mxu0 0.0
  %1493 = vmatprep.subr.mxu0 0.0
  %1494 = vmatpush1.msra.mxu0 0.0
  %1495 = vmatprep.subr.mxu0 0.0
  %1496 = vmatpush1.msra.mxu0 0.0
  %1497 = vmatprep.subr.mxu0 0.0
  %1498 = vmatpush1.msra.mxu0 0.0
  %1499 = vmatprep.subr.mxu0 0.0
  %1500 = vmatpush1.msra.mxu0 0.0
  %1501 = vmatprep.subr.mxu0 0.0
  %1502 = vmatpush1.msra.mxu0 0.0
  %1503 = vmatprep.subr.mxu0 0.0
  %1504 = vmatpush1.msra.mxu0 0.0
  %1505 = vmatprep.subr.mxu0 0.0
  %1506 = vmatpush1.msra.mxu0 0.0
  %1507 = vmatprep.subr.mxu0 0.0
  %1508 = vmatpush1.msra.mxu0 0.0
  %1509 = vmatprep.subr.mxu0 0.0
  %1510 = vmatpush1.msra.mxu0 0.0
  %1511 = vmatprep.subr.mxu0 0.0
  %1512 = vmatpush1.msra.mxu0 0.0
  %v1513 = vand.u32 %v112, 4294901760
  %1514 = vmatprep.subr.mxu0 %v1513
  %v1515 = vand.u32 %v111, 4294901760
  %1516 = vmatpush1.msra.mxu0 %v1515
  %v1517 = vand.u32 %v106, 4294901760
  %1518 = vmatprep.subr.mxu0 %v1517
  %v1519 = vand.u32 %v105, 4294901760
  %1520 = vmatpush1.msra.mxu0 %v1519
  %v1521 = vand.u32 %v100, 4294901760
  %1522 = vmatprep.subr.mxu0 %v1521
  %v1523 = vand.u32 %v99, 4294901760
  %1524 = vmatpush1.msra.mxu0 %v1523
  %v1525 = vand.u32 %v94, 4294901760
  %1526 = vmatprep.subr.mxu0 %v1525
  %v1527 = vand.u32 %v93, 4294901760
  %1528 = vmatpush1.msra.mxu0 %v1527
  %1529 = vmatprep.subr.mxu0 0.0
  %1530 = vmatpush2.msra.mxu0 0.0
  %1531 = vmatprep.subr.mxu0 0.0
  %1532 = vmatpush2.msra.mxu0 0.0
  %1533 = vmatprep.subr.mxu0 0.0
  %1534 = vmatpush2.msra.mxu0 0.0
  %1535 = vmatprep.subr.mxu0 0.0
  %1536 = vmatpush2.msra.mxu0 0.0
  %1537 = vmatprep.subr.mxu0 0.0
  %1538 = vmatpush2.msra.mxu0 0.0
  %1539 = vmatprep.subr.mxu0 0.0
  %1540 = vmatpush2.msra.mxu0 0.0
  %1541 = vmatprep.subr.mxu0 0.0
  %1542 = vmatpush2.msra.mxu0 0.0
  %1543 = vmatprep.subr.mxu0 0.0
  %1544 = vmatpush2.msra.mxu0 0.0
  %1545 = vmatprep.subr.mxu0 0.0
  %1546 = vmatpush2.msra.mxu0 0.0
  %1547 = vmatprep.subr.mxu0 0.0
  %1548 = vmatpush2.msra.mxu0 0.0
  %1549 = vmatprep.subr.mxu0 0.0
  %1550 = vmatpush2.msra.mxu0 0.0
  %1551 = vmatprep.subr.mxu0 0.0
  %1552 = vmatpush2.msra.mxu0 0.0
  %1553 = vmatprep.subr.mxu0 0.0
  %1554 = vmatpush2.msra.mxu0 0.0
  %1555 = vmatprep.subr.mxu0 0.0
  %1556 = vmatpush2.msra.mxu0 0.0
  %1557 = vmatprep.subr.mxu0 0.0
  %1558 = vmatpush2.msra.mxu0 0.0
  %1559 = vmatprep.subr.mxu0 0.0
  %1560 = vmatpush2.msra.mxu0 0.0
  %1561 = vmatprep.mubr.f32.mxu0 0.0
  %v1562 = vand.u32 %v116, 4294901760
  %v1563 = vsub.f32 %v116, %v1562
  %v1564 = vand.u32 %v1563, 4294901760
  %1565 = vmatmul.mubr.f32.gmra.mxu0 %v1564
  %v1566 = vpop.f32.mrf.mxu0
  %v1567 = vadd.f32 %v1485, %v1566
  %v1568 = vpop.f32.mrf.mxu0
  %v1569 = vadd.f32 %v1487, %v1568
  %1570 = vdwg.mxu0
  %1571 = vmatprep.subr.mxu0 0.0
  %1572 = vmatpush1.msra.mxu0 0.0
  %1573 = vmatprep.subr.mxu0 0.0
  %1574 = vmatpush1.msra.mxu0 0.0
  %1575 = vmatprep.subr.mxu0 0.0
  %1576 = vmatpush1.msra.mxu0 0.0
  %1577 = vmatprep.subr.mxu0 0.0
  %1578 = vmatpush1.msra.mxu0 0.0
  %1579 = vmatprep.subr.mxu0 0.0
  %1580 = vmatpush1.msra.mxu0 0.0
  %1581 = vmatprep.subr.mxu0 0.0
  %1582 = vmatpush1.msra.mxu0 0.0
  %1583 = vmatprep.subr.mxu0 0.0
  %1584 = vmatpush1.msra.mxu0 0.0
  %1585 = vmatprep.subr.mxu0 0.0
  %1586 = vmatpush1.msra.mxu0 0.0
  %1587 = vmatprep.subr.mxu0 0.0
  %1588 = vmatpush1.msra.mxu0 0.0
  %1589 = vmatprep.subr.mxu0 0.0
  %1590 = vmatpush1.msra.mxu0 0.0
  %1591 = vmatprep.subr.mxu0 0.0
  %1592 = vmatpush1.msra.mxu0 0.0
  %1593 = vmatprep.subr.mxu0 0.0
  %1594 = vmatpush1.msra.mxu0 0.0
  %v1595 = vand.u32 %v112, 4294901760
  %v1596 = vsub.f32 %v112, %v1595
  %v1597 = vand.u32 %v1596, 4294901760
  %1598 = vmatprep.subr.mxu0 %v1597
  %v1599 = vand.u32 %v111, 4294901760
  %v1600 = vsub.f32 %v111, %v1599
  %v1601 = vand.u32 %v1600, 4294901760
  %1602 = vmatpush1.msra.mxu0 %v1601
  %v1603 = vand.u32 %v106, 4294901760
  %v1604 = vsub.f32 %v106, %v1603
  %v1605 = vand.u32 %v1604, 4294901760
  %1606 = vmatprep.subr.mxu0 %v1605
  %v1607 = vand.u32 %v105, 4294901760
  %v1608 = vsub.f32 %v105, %v1607
  %v1609 = vand.u32 %v1608, 4294901760
  %1610 = vmatpush1.msra.mxu0 %v1609
  %v1611 = vand.u32 %v100, 4294901760
  %v1612 = vsub.f32 %v100, %v1611
  %v1613 = vand.u32 %v1612, 4294901760
  %1614 = vmatprep.subr.mxu0 %v1613
  %v1615 = vand.u32 %v99, 4294901760
  %v1616 = vsub.f32 %v99, %v1615
  %v1617 = vand.u32 %v1616, 4294901760
  %1618 = vmatpush1.msra.mxu0 %v1617
  %v1619 = vand.u32 %v94, 4294901760
  %v1620 = vsub.f32 %v94, %v1619
  %v1621 = vand.u32 %v1620, 4294901760
  %1622 = vmatprep.subr.mxu0 %v1621
  %v1623 = vand.u32 %v93, 4294901760
  %v1624 = vsub.f32 %v93, %v1623
  %v1625 = vand.u32 %v1624, 4294901760
  %1626 = vmatpush1.msra.mxu0 %v1625
  %1627 = vmatprep.subr.mxu0 0.0
  %1628 = vmatpush2.msra.mxu0 0.0
  %1629 = vmatprep.subr.mxu0 0.0
  %1630 = vmatpush2.msra.mxu0 0.0
  %1631 = vmatprep.subr.mxu0 0.0
  %1632 = vmatpush2.msra.mxu0 0.0
  %1633 = vmatprep.subr.mxu0 0.0
  %1634 = vmatpush2.msra.mxu0 0.0
  %1635 = vmatprep.subr.mxu0 0.0
  %1636 = vmatpush2.msra.mxu0 0.0
  %1637 = vmatprep.subr.mxu0 0.0
  %1638 = vmatpush2.msra.mxu0 0.0
  %1639 = vmatprep.subr.mxu0 0.0
  %1640 = vmatpush2.msra.mxu0 0.0
  %1641 = vmatprep.subr.mxu0 0.0
  %1642 = vmatpush2.msra.mxu0 0.0
  %1643 = vmatprep.subr.mxu0 0.0
  %1644 = vmatpush2.msra.mxu0 0.0
  %1645 = vmatprep.subr.mxu0 0.0
  %1646 = vmatpush2.msra.mxu0 0.0
  %1647 = vmatprep.subr.mxu0 0.0
  %1648 = vmatpush2.msra.mxu0 0.0
  %1649 = vmatprep.subr.mxu0 0.0
  %1650 = vmatpush2.msra.mxu0 0.0
  %1651 = vmatprep.subr.mxu0 0.0
  %1652 = vmatpush2.msra.mxu0 0.0
  %1653 = vmatprep.subr.mxu0 0.0
  %1654 = vmatpush2.msra.mxu0 0.0
  %1655 = vmatprep.subr.mxu0 0.0
  %1656 = vmatpush2.msra.mxu0 0.0
  %1657 = vmatprep.subr.mxu0 0.0
  %1658 = vmatpush2.msra.mxu0 0.0
  %1659 = vmatprep.mubr.f32.mxu0 0.0
  %v1660 = vand.u32 %v116, 4294901760
  %1661 = vmatmul.mubr.f32.gmra.mxu0 %v1660
  %v1662 = vpop.f32.mrf.mxu0
  %v1663 = vadd.f32 %v1567, %v1662
  %v1664 = vpop.f32.mrf.mxu0
  %v1665 = vadd.f32 %v1569, %v1664
  %1666 = vdwg.mxu0
  %1667 = vmatprep.subr.mxu0 0.0
  %1668 = vmatpush1.msra.mxu0 0.0
  %1669 = vmatprep.subr.mxu0 0.0
  %1670 = vmatpush1.msra.mxu0 0.0
  %1671 = vmatprep.subr.mxu0 0.0
  %1672 = vmatpush1.msra.mxu0 0.0
  %1673 = vmatprep.subr.mxu0 0.0
  %1674 = vmatpush1.msra.mxu0 0.0
  %1675 = vmatprep.subr.mxu0 0.0
  %1676 = vmatpush1.msra.mxu0 0.0
  %1677 = vmatprep.subr.mxu0 0.0
  %1678 = vmatpush1.msra.mxu0 0.0
  %1679 = vmatprep.subr.mxu0 0.0
  %1680 = vmatpush1.msra.mxu0 0.0
  %1681 = vmatprep.subr.mxu0 0.0
  %1682 = vmatpush1.msra.mxu0 0.0
  %1683 = vmatprep.subr.mxu0 0.0
  %1684 = vmatpush1.msra.mxu0 0.0
  %1685 = vmatprep.subr.mxu0 0.0
  %1686 = vmatpush1.msra.mxu0 0.0
  %1687 = vmatprep.subr.mxu0 0.0
  %1688 = vmatpush1.msra.mxu0 0.0
  %1689 = vmatprep.subr.mxu0 0.0
  %1690 = vmatpush1.msra.mxu0 0.0
  %v1691 = vand.u32 %v112, 4294901760
  %1692 = vmatprep.subr.mxu0 %v1691
  %v1693 = vand.u32 %v111, 4294901760
  %1694 = vmatpush1.msra.mxu0 %v1693
  %v1695 = vand.u32 %v106, 4294901760
  %1696 = vmatprep.subr.mxu0 %v1695
  %v1697 = vand.u32 %v105, 4294901760
  %1698 = vmatpush1.msra.mxu0 %v1697
  %v1699 = vand.u32 %v100, 4294901760
  %1700 = vmatprep.subr.mxu0 %v1699
  %v1701 = vand.u32 %v99, 4294901760
  %1702 = vmatpush1.msra.mxu0 %v1701
  %v1703 = vand.u32 %v94, 4294901760
  %1704 = vmatprep.subr.mxu0 %v1703
  %v1705 = vand.u32 %v93, 4294901760
  %1706 = vmatpush1.msra.mxu0 %v1705
  %1707 = vmatprep.subr.mxu0 0.0
  %1708 = vmatpush2.msra.mxu0 0.0
  %1709 = vmatprep.subr.mxu0 0.0
  %1710 = vmatpush2.msra.mxu0 0.0
  %1711 = vmatprep.subr.mxu0 0.0
  %1712 = vmatpush2.msra.mxu0 0.0
  %1713 = vmatprep.subr.mxu0 0.0
  %1714 = vmatpush2.msra.mxu0 0.0
  %1715 = vmatprep.subr.mxu0 0.0
  %1716 = vmatpush2.msra.mxu0 0.0
  %1717 = vmatprep.subr.mxu0 0.0
  %1718 = vmatpush2.msra.mxu0 0.0
  %1719 = vmatprep.subr.mxu0 0.0
  %1720 = vmatpush2.msra.mxu0 0.0
  %1721 = vmatprep.subr.mxu0 0.0
  %1722 = vmatpush2.msra.mxu0 0.0
  %1723 = vmatprep.subr.mxu0 0.0
  %1724 = vmatpush2.msra.mxu0 0.0
  %1725 = vmatprep.subr.mxu0 0.0
  %1726 = vmatpush2.msra.mxu0 0.0
  %1727 = vmatprep.subr.mxu0 0.0
  %1728 = vmatpush2.msra.mxu0 0.0
  %1729 = vmatprep.subr.mxu0 0.0
  %1730 = vmatpush2.msra.mxu0 0.0
  %1731 = vmatprep.subr.mxu0 0.0
  %1732 = vmatpush2.msra.mxu0 0.0
  %1733 = vmatprep.subr.mxu0 0.0
  %1734 = vmatpush2.msra.mxu0 0.0
  %1735 = vmatprep.subr.mxu0 0.0
  %1736 = vmatpush2.msra.mxu0 0.0
  %1737 = vmatprep.subr.mxu0 0.0
  %1738 = vmatpush2.msra.mxu0 0.0
  %1739 = vmatprep.mubr.f32.mxu0 0.0
  %v1740 = vand.u32 %v116, 4294901760
  %1741 = vmatmul.mubr.f32.gmra.mxu0 %v1740
  %v1742 = vpop.f32.mrf.mxu0
  %v1743 = vadd.f32 %v1663, %v1742
  %v1744 = vpop.f32.mrf.mxu0
  %v1745 = vadd.f32 %v1665, %v1744
  %1746 = vdwg.mxu0
  %v1747 = vsub.f32 %v657, %v1200
  %v1748 = vsub.f32 %v659, %v1202
  %v1749 = vsub.f32 %v657, %v1743
  %v1750 = vsub.f32 %v659, %v1745
  %v1751 = vmul.f32 %v1747, %v1747
  %v1752 = vmul.f32 %v1748, %v1748
  %vm1753 = vcmask 1041408
  %v1754 = vsel %vm1753, %v1751, 0.0
  %v1755 = vrot.slane %v1754, 4
  %v1756 = vadd.f32 %v1754, %v1755
  %v1757 = vrot.slane %v1756, 2
  %v1758 = vadd.f32 %v1756, %v1757
  %v1759 = vrot.slane %v1758, 1
  %v1760 = vadd.f32 %v1758, %v1759
  %v1761 = vsel %vm1753, %v1752, 0.0
  %v1762 = vrot.slane %v1761, 4
  %v1763 = vadd.f32 %v1761, %v1762
  %v1764 = vrot.slane %v1763, 2
  %v1765 = vadd.f32 %v1763, %v1764
  %v1766 = vrot.slane %v1765, 1
  %v1767 = vadd.f32 %v1765, %v1766
  %v1768 = vmul.f32 %v1749, %v1749
  %v1769 = vmul.f32 %v1750, %v1750
  %v1770 = vsel %vm1753, %v1768, 0.0
  %v1771 = vrot.slane %v1770, 4
  %v1772 = vadd.f32 %v1770, %v1771
  %v1773 = vrot.slane %v1772, 2
  %v1774 = vadd.f32 %v1772, %v1773
  %v1775 = vrot.slane %v1774, 1
  %v1776 = vadd.f32 %v1774, %v1775
  %v1777 = vsel %vm1753, %v1769, 0.0
  %v1778 = vrot.slane %v1777, 4
  %v1779 = vadd.f32 %v1777, %v1778
  %v1780 = vrot.slane %v1779, 2
  %v1781 = vadd.f32 %v1779, %v1780
  %v1782 = vrot.slane %v1781, 1
  %v1783 = vadd.f32 %v1781, %v1782
  %v1784 = vsub.f32 %v1760, %v1776
  %v1785 = vsub.f32 %v1767, %v1783
  %v1786 = vmax.f32 %v1784, 0.0
  %v1787 = vmax.f32 %v1785, 0.0
  %v1788 = vand.u32 2147483647, %v1784
  %v1789 = vand.u32 2147483647, %v1785
  %v1790 = vsub.f32 0.0, %v1788
  %v1791 = vsub.f32 0.0, %v1789
  %v1792 = vmul.f32 %v1790, 1.442695
  %v1793 = vpow.pop %v1792
  %v1794 = vmul.f32 %v1791, 1.442695
  %v1795 = vpow.pop %v1794
  %v1796 = vadd.f32 %v1793, 1.0
  %v1797 = vlog2.pop %v1796
  %v1798 = vmul.f32 %v1797, 0.6931472
  %v1799 = vmul.f32 -0.5, %v1793
  %v1800 = vadd.f32 %v1799, 1.0
  %v1801 = vmul.f32 %v1800, %v1793
  %v1802 = vand.u32 2147483647, %v1793
  %vm1803 = vcmp.lt.f32.partialorder %v1802, 0.0004427343
  %v1804 = vsel %vm1803, %v1801, %v1798
  %v1805 = vadd.f32 %v1795, 1.0
  %v1806 = vlog2.pop %v1805
  %v1807 = vmul.f32 %v1806, 0.6931472
  %v1808 = vmul.f32 -0.5, %v1795
  %v1809 = vadd.f32 %v1808, 1.0
  %v1810 = vmul.f32 %v1809, %v1795
  %v1811 = vand.u32 2147483647, %v1795
  %vm1812 = vcmp.lt.f32.partialorder %v1811, 0.0004427343
  %v1813 = vsel %vm1812, %v1810, %v1807
  %v1814 = vadd.f32 %v1786, %v1804
  %v1815 = vadd.f32 %v1787, %v1813
  %v1818 = vcombine.low %v1814, %v1815
  %v1820 = vunpack.c.l.s4 1966171168
  %v1821 = vunpack.c.0.s8 %v1820
  %v1822 = vlaneseq
  %v1823 = vshrl.u32 %v1822, 7
  %v1824 = vsub.s32 %v1821, %v1823
  %v1825 = vrot.slane %v1818, %v1824
  %v1827 = vunpack.c.l.s4 1966171168
  %v1828 = vunpack.c.0.s8 %v1827
  %v1829 = vlaneseq
  %v1830 = vshrl.u32 %v1829, 7
  %v1831 = vsub.s32 %v1828, %v1830
  %v1832 = vrot.slane %v1825, %v1831
  %v1834 = vlaneseq
  %vm1835 = vcmp.ge.s32.totalorder %v1834, 0
  %vm1836 = vcmp.lt.s32.totalorder %v1834, 256
  %vm1837 = vmand %vm1835, %vm1836
  %1838 = vst.msk [vmem:[%s2] sm:$0x3] %vm1837, %v1832
  // Predicated region
  $region10: #{triplet_dist_forward.1} parent=0 // pred_check
    _
  $region11: #{triplet_dist_forward.1} parent=0 // pred_check_branch
    %1840 = sbr.rel (0) target = $region13
  $region12: #{triplet_dist_forward.1} parent=0 // pred_region
    _
  $region13: #{triplet_dist_forward.1} parent=0 // pred_fallthru
    _
  // Predicated region
  $region14: #{triplet_dist_forward.1} parent=0 // pred_check
    _
  $region15: #{triplet_dist_forward.1} parent=0 // pred_check_branch
    %1842 = sbr.rel (0) target = $region17
  $region16: #{triplet_dist_forward.1} parent=0 // pred_region
    _
  $region17: #{triplet_dist_forward.1} parent=0 // pred_fallthru
    _

</llo_original>
